<compile_context>
chip_gen: v6e
topology: v6e:2x2x1
jax: 0.10.0
libtpu: 0.0.40
codegen_flags: <defaults>
</compile_context>

<pallas_src>
import math
import functools

import jax
import jax.numpy as jnp
from jax import lax
from jax.experimental import pallas as pl
from jax.experimental.pallas import tpu as pltpu


def _node_emb_kernel(num_layers, ndim,
                     h0_ref, gsrc_ref, gdst_ref,
                     wmsg_ref, bmsg_ref, wgru_ref, bgru_ref, out_ref):
    n1, n2, n4 = ndim, 2 * ndim, 4 * ndim
    dot = lambda a, b: jnp.dot(a, b, preferred_element_type=jnp.float32)
    # transposed contraction (contract axis 0 of both operands) -> scatter-add
    dotT = lambda a, b: lax.dot_general(
        a, b, dimension_numbers=(((0,), (0,)), ((), ())),
        preferred_element_type=jnp.float32)

    h = h0_ref[...]          # [N, n]   initial node embeddings (f32)
    g_src = gsrc_ref[...]    # [E, N]   one_hot(edge src), f32
    g_dst = gdst_ref[...]    # [E, N]   one_hot(edge dst), f32

    # F.dropout(training=False) is the identity -> eval semantics, no dropout.
    for l in range(num_layers):
        # --- per-endpoint projections: ONE lane-dense matmul --------------------
        #   hw[:, :4n] = [h @ Wmsg_fwd_top | h @ Wmsg_rev_bot]   (per-source part)
        #   hw[:, 4n:] = [h @ Wmsg_fwd_bot | h @ Wmsg_rev_top]   (per-target part)
        hw = dot(h, wmsg_ref[l])                                   # [N, 8n]

        # --- gather + fused fwd/rev message linear (associativity) -------------
        #   m[:, :2n] = a_fwd = msg([h_src | h_dst])   (aggregates onto dst)
        #   m[:, 2n:] = a_rev = msg_rev([h_dst | h_src]) (aggregates onto src)
        m = dot(g_src, hw[:, :n4]) + dot(g_dst, hw[:, n4:]) + bmsg_ref[l]   # [E, 4n]

        # --- scatter-add via transposed contraction on the one-hots ------------
        aggr = dotT(g_dst, m[:, :n2]) + dotT(g_src, m[:, n2:])    # [N, 2n]

        # --- fused GRUCell(aggr, h): one [N,3n] x [3n,4n] matmul ----------------
        x = jnp.concatenate([aggr, h], axis=1)                     # [N, 3n]
        gates = dot(x, wgru_ref[l]) + bgru_ref[l]                  # [N, 4n] = (rz|gi_n|gh_n)
        rz = jax.nn.sigmoid(gates[:, :n2])                         # one sigmoid over r|z
        r = rz[:, :n1]
        z = rz[:, n1:]
        ng = jnp.tanh(gates[:, n2:n2 + n1] + r * gates[:, n2 + n1:])
        h = (1.0 - z) * ng + z * h

    out_ref[...] = h


def fuse_params(params, ndim):
    """One-time weight fusion (hoisted out of the per-call path)."""
    n = ndim
    Wf, Wr = params['msgW'], params['msgrW']            # [L, 2n, 2n] (= linear.weight.T)
    # hw = h @ wmsg ;  columns: [fwd_top | rev_bot | fwd_bot | rev_top]
    wmsg = jnp.concatenate([Wf[:, :n, :], Wr[:, n:, :],
                            Wf[:, n:, :], Wr[:, :n, :]], axis=2)    # [L, n, 8n]
    bmsg = jnp.concatenate([params['msgB'], params['msgrB']], axis=2)  # [L, 1, 4n]

    Wih, Whh = params['Wih'], params['Whh']              # [L, 2n, 3n], [L, n, 3n]
    L = Wih.shape[0]
    z_top = jnp.zeros((L, 2 * n, n), jnp.float32)
    z_bot = jnp.zeros((L, n, n), jnp.float32)
    top = jnp.concatenate([Wih[:, :, :2 * n], Wih[:, :, 2 * n:], z_top], axis=2)  # [L, 2n, 4n]
    bot = jnp.concatenate([Whh[:, :, :2 * n], z_bot, Whh[:, :, 2 * n:]], axis=2)  # [L, n, 4n]
    wgru = jnp.concatenate([top, bot], axis=1)                                     # [L, 3n, 4n]
    bgru = jnp.concatenate(
        [params['bih'][:, :, :2 * n] + params['bhh'][:, :, :2 * n],
         params['bih'][:, :, 2 * n:], params['bhh'][:, :, 2 * n:]], axis=2)        # [L, 1, 4n]

    return {'emb': params['emb'], 'wmsg': wmsg, 'bmsg': bmsg,
            'wgru': wgru, 'bgru': bgru}


def build_graph_operands(edge_index, num_nodes):
    """One-time per-graph one-hot construction (f32, no casts in the kernel)."""
    g_src = jax.nn.one_hot(edge_index[0], num_nodes, dtype=jnp.float32)   # [E, N]
    g_dst = jax.nn.one_hot(edge_index[1], num_nodes, dtype=jnp.float32)   # [E, N]
    return g_src, g_dst


@functools.partial(jax.jit, static_argnames=('num_layers', 'ndim'))
def node_emb_forward(fused, g_src, g_dst, node_atts, *, num_layers, ndim):
    N = node_atts.shape[0]
    # Embedding lookup stays in the (jitted) wrapper: trivial gather on a tiny table.
    h0 = fused['emb'][node_atts].astype(jnp.float32)                      # [N, ndim]

    args = [h0, g_src, g_dst, fused['wmsg'], fused['bmsg'],
            fused['wgru'], fused['bgru']]

    kernel = functools.partial(_node_emb_kernel, num_layers, ndim)
    return pl.pallas_call(
        kernel,
        out_shape=jax.ShapeDtypeStruct((N, ndim), jnp.float32),
        in_specs=[pl.BlockSpec(memory_space=pltpu.MemorySpace.VMEM) for _ in args],
        out_specs=pl.BlockSpec(memory_space=pltpu.MemorySpace.VMEM),
    )(*args)


def init_params(key, *, ndim, num_layers, num_node_atts):
    keys = iter(jax.random.split(key, 2 + 8 * num_layers))
    nk = lambda: next(keys)

    def uniform(k, shape, bound):
        return jax.random.uniform(k, shape, jnp.float32, -bound, bound)

    p = {'emb': jax.random.normal(nk(), (num_node_atts, ndim), jnp.float32)}

    b_msg = 1.0 / math.sqrt(2 * ndim)   # nn.Linear(2n, 2n) default init bound
    b_gru = 1.0 / math.sqrt(ndim)       # nn.GRUCell(2n, n) default init bound
    msgW, msgB, msgrW, msgrB = [], [], [], []
    Wih, Whh, bih, bhh = [], [], [], []
    for _ in range(num_layers):
        msgW.append(uniform(nk(), (2 * ndim, 2 * ndim), b_msg))   # msg.weight.T
        msgB.append(uniform(nk(), (1, 2 * ndim), b_msg))
        msgrW.append(uniform(nk(), (2 * ndim, 2 * ndim), b_msg))  # msg_rev.weight.T
        msgrB.append(uniform(nk(), (1, 2 * ndim), b_msg))
        Wih.append(uniform(nk(), (2 * ndim, 3 * ndim), b_gru))    # GRUCell weight_ih.T, cols r|z|n
        Whh.append(uniform(nk(), (ndim, 3 * ndim), b_gru))        # GRUCell weight_hh.T, cols r|z|n
        bih.append(uniform(nk(), (1, 3 * ndim), b_gru))
        bhh.append(uniform(nk(), (1, 3 * ndim), b_gru))

    for name, lst in [('msgW', msgW), ('msgB', msgB), ('msgrW', msgrW), ('msgrB', msgrB),
                      ('Wih', Wih), ('Whh', Whh), ('bih', bih), ('bhh', bhh)]:
        p[name] = jnp.stack(lst)
    return p


def reference_forward(params, edge_index, node_atts, *, num_layers, ndim):
    """Pure-JAX reference mirroring the PyTorch NodeEmb (gather + segment_sum, eval mode)."""
    N = node_atts.shape[0]
    E = edge_index.shape[1]
    h = params['emb'][node_atts]
    src = jnp.concatenate([edge_index[0], edge_index[1]])   # augmented edge sources
    dst = jnp.concatenate([edge_index[1], edge_index[0]])   # augmented edge targets
    for l in range(num_layers):
        h_j, h_i = h[src], h[dst]
        m = jnp.concatenate([h_j, h_i], axis=1)
        m_f, m_r = m[:E], m[E:]
        a = jnp.concatenate([m_f @ params['msgW'][l] + params['msgB'][l],
                             m_r @ params['msgrW'][l] + params['msgrB'][l]], axis=0)
        aggr = jax.ops.segment_sum(a, dst, num_segments=N)
        gi = aggr @ params['Wih'][l] + params['bih'][l]
        gh = h @ params['Whh'][l] + params['bhh'][l]
        r = jax.nn.sigmoid(gi[:, :ndim] + gh[:, :ndim])
        z = jax.nn.sigmoid(gi[:, ndim:2 * ndim] + gh[:, ndim:2 * ndim])
        n = jnp.tanh(gi[:, 2 * ndim:] + r * gh[:, 2 * ndim:])
        h = (1.0 - z) * n + z * h
    return h


if __name__ == "__main__":
    # Small config consistent with the module's constructor.
    ndim = 32
    num_layers = 2
    num_node_atts = 5
    N, E = 16, 24    # nodes, edges (before reverse augmentation)

    key = jax.random.PRNGKey(0)
    kp, ka, ke = jax.random.split(key, 3)

    params = init_params(kp, ndim=ndim, num_layers=num_layers,
                         num_node_atts=num_node_atts)
    node_atts = jax.random.randint(ka, (N,), 0, num_node_atts)
    edge_index = jax.random.randint(ke, (2, E), 0, N)

    # One-time prep (hoisted out of the per-call path).
    fused = fuse_params(params, ndim)
    g_src, g_dst = build_graph_operands(edge_index, N)

    out = node_emb_forward(fused, g_src, g_dst, node_atts,
                           num_layers=num_layers, ndim=ndim)
    out = jax.block_until_ready(out)

    ref = reference_forward(params, edge_index, node_atts,
                            num_layers=num_layers, ndim=ndim)
    assert out.shape == (N, ndim), out.shape
    if not jnp.allclose(out, ref, atol=1e-4, rtol=1e-4):
        err = jnp.max(jnp.abs(out - ref))
        raise AssertionError(f"Pallas kernel mismatch (max abs err {err}):\n{out}\nvs\n{ref}")
    print("KERNEL_OK")
</pallas_src>

<mosaic_0001>
module attributes {stable_mosaic.version = 11 : i64} {
  func.func @_node_emb_kernel(%arg0: memref<16x32xf32, #tpu.memory_space<vmem>>, %arg1: memref<24x16xf32, #tpu.memory_space<vmem>>, %arg2: memref<24x16xf32, #tpu.memory_space<vmem>>, %arg3: memref<2x32x256xf32, #tpu.memory_space<vmem>>, %arg4: memref<2x1x128xf32, #tpu.memory_space<vmem>>, %arg5: memref<2x96x128xf32, #tpu.memory_space<vmem>>, %arg6: memref<2x1x128xf32, #tpu.memory_space<vmem>>, %arg7: memref<16x32xf32, #tpu.memory_space<vmem>>) attributes {dimension_semantics = [], scalar_prefetch = 0 : i64, scratch_operands = 0 : i64, tpu.core_type = #tpu.core_type<tc>} {
    %c0 = arith.constant 0 : index
    %c0_0 = arith.constant 0 : index
    %0 = vector.load %arg0[%c0, %c0_0] : memref<16x32xf32, #tpu.memory_space<vmem>>, vector<16x32xf32>
    %c0_1 = arith.constant 0 : index
    %c0_2 = arith.constant 0 : index
    %1 = vector.load %arg1[%c0_1, %c0_2] : memref<24x16xf32, #tpu.memory_space<vmem>>, vector<24x16xf32>
    %c0_3 = arith.constant 0 : index
    %c0_4 = arith.constant 0 : index
    %2 = vector.load %arg2[%c0_3, %c0_4] : memref<24x16xf32, #tpu.memory_space<vmem>>, vector<24x16xf32>
    %c0_5 = arith.constant 0 : index
    %c0_6 = arith.constant 0 : index
    %c0_7 = arith.constant 0 : index
    %3 = vector.load %arg3[%c0_5, %c0_6, %c0_7] : memref<2x32x256xf32, #tpu.memory_space<vmem>>, vector<1x32x256xf32>
    %4 = vector.shape_cast %3 : vector<1x32x256xf32> to vector<32x256xf32>
    %cst = arith.constant dense<0.000000e+00> : vector<16x256xf32>
    %5 = tpu.matmul %0, %4, %cst {dimension_numbers = #tpu.dot_dimension_numbers<[1], [0], [0], [1], [0, 0, 1, 1], [], []>} : vector<16x32xf32>, vector<32x256xf32>, vector<16x256xf32> -> vector<16x256xf32>
    %6 = vector.extract_strided_slice %5 {offsets = [0, 0], sizes = [16, 128], strides = [1, 1]} : vector<16x256xf32> to vector<16x128xf32>
    %cst_8 = arith.constant dense<0.000000e+00> : vector<24x128xf32>
    %7 = tpu.matmul %1, %6, %cst_8 {dimension_numbers = #tpu.dot_dimension_numbers<[1], [0], [0], [1], [0, 0, 1, 1], [], []>} : vector<24x16xf32>, vector<16x128xf32>, vector<24x128xf32> -> vector<24x128xf32>
    %8 = vector.extract_strided_slice %5 {offsets = [0, 128], sizes = [16, 128], strides = [1, 1]} : vector<16x256xf32> to vector<16x128xf32>
    %cst_9 = arith.constant dense<0.000000e+00> : vector<24x128xf32>
    %9 = tpu.matmul %2, %8, %cst_9 {dimension_numbers = #tpu.dot_dimension_numbers<[1], [0], [0], [1], [0, 0, 1, 1], [], []>} : vector<24x16xf32>, vector<16x128xf32>, vector<24x128xf32> -> vector<24x128xf32>
    %10 = arith.addf %7, %9 : vector<24x128xf32>
    %c0_10 = arith.constant 0 : index
    %c0_11 = arith.constant 0 : index
    %c0_12 = arith.constant 0 : index
    %11 = vector.load %arg4[%c0_10, %c0_11, %c0_12] : memref<2x1x128xf32, #tpu.memory_space<vmem>>, vector<1x1x128xf32>
    %12 = vector.shape_cast %11 : vector<1x1x128xf32> to vector<1x128xf32>
    %13 = vector.broadcast %12 : vector<1x128xf32> to vector<24x128xf32>
    %14 = arith.addf %10, %13 : vector<24x128xf32>
    %15 = vector.extract_strided_slice %14 {offsets = [0, 0], sizes = [24, 64], strides = [1, 1]} : vector<24x128xf32> to vector<24x64xf32>
    %cst_13 = arith.constant dense<0.000000e+00> : vector<16x64xf32>
    %16 = tpu.matmul %2, %15, %cst_13 {dimension_numbers = #tpu.dot_dimension_numbers<[0], [0], [1], [1], [0, 1, 1, 1], [], []>} : vector<24x16xf32>, vector<24x64xf32>, vector<16x64xf32> -> vector<16x64xf32>
    %17 = vector.extract_strided_slice %14 {offsets = [0, 64], sizes = [24, 64], strides = [1, 1]} : vector<24x128xf32> to vector<24x64xf32>
    %cst_14 = arith.constant dense<0.000000e+00> : vector<16x64xf32>
    %18 = tpu.matmul %1, %17, %cst_14 {dimension_numbers = #tpu.dot_dimension_numbers<[0], [0], [1], [1], [0, 1, 1, 1], [], []>} : vector<24x16xf32>, vector<24x64xf32>, vector<16x64xf32> -> vector<16x64xf32>
    %19 = arith.addf %16, %18 : vector<16x64xf32>
    %20 = tpu.concatenate %19, %0 in 1 : vector<16x64xf32>, vector<16x32xf32> -> vector<16x96xf32>
    %c0_15 = arith.constant 0 : index
    %c0_16 = arith.constant 0 : index
    %c0_17 = arith.constant 0 : index
    %21 = vector.load %arg5[%c0_15, %c0_16, %c0_17] : memref<2x96x128xf32, #tpu.memory_space<vmem>>, vector<1x96x128xf32>
    %22 = vector.shape_cast %21 : vector<1x96x128xf32> to vector<96x128xf32>
    %cst_18 = arith.constant dense<0.000000e+00> : vector<16x128xf32>
    %23 = tpu.matmul %20, %22, %cst_18 {dimension_numbers = #tpu.dot_dimension_numbers<[1], [0], [0], [1], [0, 0, 1, 1], [], []>} : vector<16x96xf32>, vector<96x128xf32>, vector<16x128xf32> -> vector<16x128xf32>
    %c0_19 = arith.constant 0 : index
    %c0_20 = arith.constant 0 : index
    %c0_21 = arith.constant 0 : index
    %24 = vector.load %arg6[%c0_19, %c0_20, %c0_21] : memref<2x1x128xf32, #tpu.memory_space<vmem>>, vector<1x1x128xf32>
    %25 = vector.shape_cast %24 : vector<1x1x128xf32> to vector<1x128xf32>
    %26 = vector.broadcast %25 : vector<1x128xf32> to vector<16x128xf32>
    %27 = arith.addf %23, %26 : vector<16x128xf32>
    %28 = vector.extract_strided_slice %27 {offsets = [0, 0], sizes = [16, 64], strides = [1, 1]} : vector<16x128xf32> to vector<16x64xf32>
    %29 = arith.negf %28 : vector<16x64xf32>
    %30 = math.exp %29 : vector<16x64xf32>
    %cst_22 = arith.constant 1.000000e+00 : f32
    %31 = vector.broadcast %cst_22 : f32 to vector<16x64xf32>
    %32 = arith.addf %31, %30 : vector<16x64xf32>
    %33 = arith.divf %31, %32 : vector<16x64xf32>
    %34 = vector.extract_strided_slice %33 {offsets = [0, 0], sizes = [16, 32], strides = [1, 1]} : vector<16x64xf32> to vector<16x32xf32>
    %35 = vector.extract_strided_slice %33 {offsets = [0, 32], sizes = [16, 32], strides = [1, 1]} : vector<16x64xf32> to vector<16x32xf32>
    %36 = vector.extract_strided_slice %27 {offsets = [0, 64], sizes = [16, 32], strides = [1, 1]} : vector<16x128xf32> to vector<16x32xf32>
    %37 = vector.extract_strided_slice %27 {offsets = [0, 96], sizes = [16, 32], strides = [1, 1]} : vector<16x128xf32> to vector<16x32xf32>
    %38 = arith.mulf %34, %37 : vector<16x32xf32>
    %39 = arith.addf %36, %38 : vector<16x32xf32>
    %40 = math.tanh %39 : vector<16x32xf32>
    %cst_23 = arith.constant 1.000000e+00 : f32
    %41 = vector.broadcast %cst_23 : f32 to vector<16x32xf32>
    %42 = arith.subf %41, %35 : vector<16x32xf32>
    %43 = arith.mulf %42, %40 : vector<16x32xf32>
    %44 = arith.mulf %35, %0 : vector<16x32xf32>
    %45 = arith.addf %43, %44 : vector<16x32xf32>
    %c1 = arith.constant 1 : index
    %c0_24 = arith.constant 0 : index
    %c0_25 = arith.constant 0 : index
    %46 = vector.load %arg3[%c1, %c0_24, %c0_25] : memref<2x32x256xf32, #tpu.memory_space<vmem>>, vector<1x32x256xf32>
    %47 = vector.shape_cast %46 : vector<1x32x256xf32> to vector<32x256xf32>
    %cst_26 = arith.constant dense<0.000000e+00> : vector<16x256xf32>
    %48 = tpu.matmul %45, %47, %cst_26 {dimension_numbers = #tpu.dot_dimension_numbers<[1], [0], [0], [1], [0, 0, 1, 1], [], []>} : vector<16x32xf32>, vector<32x256xf32>, vector<16x256xf32> -> vector<16x256xf32>
    %49 = vector.extract_strided_slice %48 {offsets = [0, 0], sizes = [16, 128], strides = [1, 1]} : vector<16x256xf32> to vector<16x128xf32>
    %cst_27 = arith.constant dense<0.000000e+00> : vector<24x128xf32>
    %50 = tpu.matmul %1, %49, %cst_27 {dimension_numbers = #tpu.dot_dimension_numbers<[1], [0], [0], [1], [0, 0, 1, 1], [], []>} : vector<24x16xf32>, vector<16x128xf32>, vector<24x128xf32> -> vector<24x128xf32>
    %51 = vector.extract_strided_slice %48 {offsets = [0, 128], sizes = [16, 128], strides = [1, 1]} : vector<16x256xf32> to vector<16x128xf32>
    %cst_28 = arith.constant dense<0.000000e+00> : vector<24x128xf32>
    %52 = tpu.matmul %2, %51, %cst_28 {dimension_numbers = #tpu.dot_dimension_numbers<[1], [0], [0], [1], [0, 0, 1, 1], [], []>} : vector<24x16xf32>, vector<16x128xf32>, vector<24x128xf32> -> vector<24x128xf32>
    %53 = arith.addf %50, %52 : vector<24x128xf32>
    %c1_29 = arith.constant 1 : index
    %c0_30 = arith.constant 0 : index
    %c0_31 = arith.constant 0 : index
    %54 = vector.load %arg4[%c1_29, %c0_30, %c0_31] : memref<2x1x128xf32, #tpu.memory_space<vmem>>, vector<1x1x128xf32>
    %55 = vector.shape_cast %54 : vector<1x1x128xf32> to vector<1x128xf32>
    %56 = vector.broadcast %55 : vector<1x128xf32> to vector<24x128xf32>
    %57 = arith.addf %53, %56 : vector<24x128xf32>
    %58 = vector.extract_strided_slice %57 {offsets = [0, 0], sizes = [24, 64], strides = [1, 1]} : vector<24x128xf32> to vector<24x64xf32>
    %cst_32 = arith.constant dense<0.000000e+00> : vector<16x64xf32>
    %59 = tpu.matmul %2, %58, %cst_32 {dimension_numbers = #tpu.dot_dimension_numbers<[0], [0], [1], [1], [0, 1, 1, 1], [], []>} : vector<24x16xf32>, vector<24x64xf32>, vector<16x64xf32> -> vector<16x64xf32>
    %60 = vector.extract_strided_slice %57 {offsets = [0, 64], sizes = [24, 64], strides = [1, 1]} : vector<24x128xf32> to vector<24x64xf32>
    %cst_33 = arith.constant dense<0.000000e+00> : vector<16x64xf32>
    %61 = tpu.matmul %1, %60, %cst_33 {dimension_numbers = #tpu.dot_dimension_numbers<[0], [0], [1], [1], [0, 1, 1, 1], [], []>} : vector<24x16xf32>, vector<24x64xf32>, vector<16x64xf32> -> vector<16x64xf32>
    %62 = arith.addf %59, %61 : vector<16x64xf32>
    %63 = tpu.concatenate %62, %45 in 1 : vector<16x64xf32>, vector<16x32xf32> -> vector<16x96xf32>
    %c1_34 = arith.constant 1 : index
    %c0_35 = arith.constant 0 : index
    %c0_36 = arith.constant 0 : index
    %64 = vector.load %arg5[%c1_34, %c0_35, %c0_36] : memref<2x96x128xf32, #tpu.memory_space<vmem>>, vector<1x96x128xf32>
    %65 = vector.shape_cast %64 : vector<1x96x128xf32> to vector<96x128xf32>
    %cst_37 = arith.constant dense<0.000000e+00> : vector<16x128xf32>
    %66 = tpu.matmul %63, %65, %cst_37 {dimension_numbers = #tpu.dot_dimension_numbers<[1], [0], [0], [1], [0, 0, 1, 1], [], []>} : vector<16x96xf32>, vector<96x128xf32>, vector<16x128xf32> -> vector<16x128xf32>
    %c1_38 = arith.constant 1 : index
    %c0_39 = arith.constant 0 : index
    %c0_40 = arith.constant 0 : index
    %67 = vector.load %arg6[%c1_38, %c0_39, %c0_40] : memref<2x1x128xf32, #tpu.memory_space<vmem>>, vector<1x1x128xf32>
    %68 = vector.shape_cast %67 : vector<1x1x128xf32> to vector<1x128xf32>
    %69 = vector.broadcast %68 : vector<1x128xf32> to vector<16x128xf32>
    %70 = arith.addf %66, %69 : vector<16x128xf32>
    %71 = vector.extract_strided_slice %70 {offsets = [0, 0], sizes = [16, 64], strides = [1, 1]} : vector<16x128xf32> to vector<16x64xf32>
    %72 = arith.negf %71 : vector<16x64xf32>
    %73 = math.exp %72 : vector<16x64xf32>
    %cst_41 = arith.constant 1.000000e+00 : f32
    %74 = vector.broadcast %cst_41 : f32 to vector<16x64xf32>
    %75 = arith.addf %74, %73 : vector<16x64xf32>
    %76 = arith.divf %74, %75 : vector<16x64xf32>
    %77 = vector.extract_strided_slice %76 {offsets = [0, 0], sizes = [16, 32], strides = [1, 1]} : vector<16x64xf32> to vector<16x32xf32>
    %78 = vector.extract_strided_slice %76 {offsets = [0, 32], sizes = [16, 32], strides = [1, 1]} : vector<16x64xf32> to vector<16x32xf32>
    %79 = vector.extract_strided_slice %70 {offsets = [0, 64], sizes = [16, 32], strides = [1, 1]} : vector<16x128xf32> to vector<16x32xf32>
    %80 = vector.extract_strided_slice %70 {offsets = [0, 96], sizes = [16, 32], strides = [1, 1]} : vector<16x128xf32> to vector<16x32xf32>
    %81 = arith.mulf %77, %80 : vector<16x32xf32>
    %82 = arith.addf %79, %81 : vector<16x32xf32>
    %83 = math.tanh %82 : vector<16x32xf32>
    %cst_42 = arith.constant 1.000000e+00 : f32
    %84 = vector.broadcast %cst_42 : f32 to vector<16x32xf32>
    %85 = arith.subf %84, %78 : vector<16x32xf32>
    %86 = arith.mulf %85, %83 : vector<16x32xf32>
    %87 = arith.mulf %78, %45 : vector<16x32xf32>
    %88 = arith.addf %86, %87 : vector<16x32xf32>
    %c0_43 = arith.constant 0 : index
    %c0_44 = arith.constant 0 : index
    %89 = vector.load %arg7[%c0_43, %c0_44] : memref<16x32xf32, #tpu.memory_space<vmem>>, vector<16x32xf32>
    tpu.vector_store %arg7[%c0_43, %c0_44], %88 {strides = array<i32>} : memref<16x32xf32, #tpu.memory_space<vmem>>, vector<16x32xf32>,
    return
  }
}

</mosaic_0001>

<llo_original>
// kernel: node_emb_forward.1
$region0: #{node_emb_forward.1}
  #allocation0 [shape = 'u32[]', space=smem, size = 0x4, offset = 0x4, fixed_abs, tag = 'smem constant byte address 0x4 - core index']
  #allocation1 [shape = 'u32[144,128]{1,0:T(1,128)}', space=vmem, size = 0x12000, scoped, tag = 'internal scratch']
  %s0 = inlined_call_operand.vmem [shape: f32[16,32], index: 0, kind: input, shape index: {}]
  %s1 = inlined_call_operand.vmem [shape: f32[24,16], index: 1, kind: input, shape index: {}]
  %s2 = inlined_call_operand.vmem [shape: f32[24,16], index: 2, kind: input, shape index: {}]
  %s3 = inlined_call_operand.hbm [shape: f32[2,32,256], index: 3, kind: input, shape index: {}]
  %s4 = inlined_call_operand.vmem [shape: f32[2,1,128], index: 4, kind: input, shape index: {}]
  %s5 = inlined_call_operand.vmem [shape: f32[2,96,128], index: 5, kind: input, shape index: {}]
  %s6 = inlined_call_operand.vmem [shape: f32[2,1,128], index: 6, kind: input, shape index: {}]
  %s7 = inlined_call_operand.hbm [shape: f32[16,32], index: 7, kind: output, shape index: {}]
  %s8 = sld [smem:[#allocation0]]
  $region42: #{node_emb_forward.1} parent=0
    _
  %s10 = ssub.s32 1, %s8
  %s11 = scalar_select 0, %s10, %s8
  $region1: #{node_emb_forward.1} parent=0
    #allocation2 [shape = 'u8[65536]{0}', space=vmem, size = 0x10000, scoped, tag = 'input window, operand 3, single buffered']
    #allocation3 [shape = 's32[1]{0}', space=sflag, size = 0x4, scoped, tag = 'scoped memory for node_emb_forward.1']
    #allocation4 [shape = 's32[1]{0}', space=sflag, size = 0x4, scoped, tag = 'scoped memory for node_emb_forward.1']
    #allocation5 [shape = 'u8[8192]{0}', space=vmem, size = 0x2000, scoped, tag = 'output window, operand 0, single buffered']
    %12 = vsyncpa [#allocation3], 0
    %13 = vsyncpa [#allocation4], 0
    // Predicated region
    $region2: #{node_emb_forward.1} parent=1 // pred_check
      _
    $region3: #{node_emb_forward.1} parent=1 // pred_check_branch
      %15 = sbr.rel (0) target = $region5
    $region4: #{node_emb_forward.1} parent=1 // pred_region
      _
    $region5: #{node_emb_forward.1} parent=1 // pred_fallthru
      _
    // Predicated region
    $region6: #{node_emb_forward.1} parent=1 // pred_check
      _
    $region7: #{node_emb_forward.1} parent=1 // pred_check_branch
      %17 = sbr.rel (0) target = $region9
    $region8: #{node_emb_forward.1} parent=1 // pred_region
      _
    $region9: #{node_emb_forward.1} parent=1 // pred_fallthru
      _
    // Predicated region
    $region10: #{node_emb_forward.1} parent=1 // pred_check
      _
    $region11: #{node_emb_forward.1} parent=1 // pred_check_branch
      %19 = sbr.rel (0) target = $region13
    $region12: #{node_emb_forward.1} parent=1 // pred_region
      _
    $region13: #{node_emb_forward.1} parent=1 // pred_fallthru
      _
    // Predicated region
    $region14: #{node_emb_forward.1} parent=1 // pred_check
      _
    $region15: #{node_emb_forward.1} parent=1 // pred_check_branch
      %21 = sbr.rel (0) target = $region17
    $region16: #{node_emb_forward.1} parent=1 // pred_region
      %s23 = ssub.s32 2048, 2048
      %24 = vsyncadd [#allocation3], %s23
      %s25 = sshll.u32 [#allocation2], 4
      %s26 = int_to_ptr.vmem [resolvable:$true] %s25
      %31 = dma.hbm_to_vmem [thread:$0]  %s3, 2048, %s26, [#allocation3], 256, 256, 16
    $region17: #{node_emb_forward.1} parent=1 // pred_fallthru
      _
    // Predicated region
    $region18: #{node_emb_forward.1} parent=1 // pred_check
      _
    $region19: #{node_emb_forward.1} parent=1 // pred_check_branch
      %33 = sbr.rel (0) target = $region21
    $region20: #{node_emb_forward.1} parent=1 // pred_region
      _
    $region21: #{node_emb_forward.1} parent=1 // pred_fallthru
      _
    // Predicated region
    $region22: #{node_emb_forward.1} parent=1 // pred_check
      _
    $region23: #{node_emb_forward.1} parent=1 // pred_check_branch
      %35 = sbr.rel (0) target = $region25
    $region24: #{node_emb_forward.1} parent=1 // pred_region
      _
    $region25: #{node_emb_forward.1} parent=1 // pred_fallthru
      _
    // Predicated region
    $region26: #{node_emb_forward.1} parent=1 // pred_check
      _
    $region27: #{node_emb_forward.1} parent=1 // pred_check_branch
      %37 = sbr.rel (0) target = $region29
    $region28: #{node_emb_forward.1} parent=1 // pred_region
      _
    $region29: #{node_emb_forward.1} parent=1 // pred_fallthru
      _
    // Predicated region
    $region30: #{node_emb_forward.1} parent=1 // pred_check
      _
    $region31: #{node_emb_forward.1} parent=1 // pred_check_branch
      %39 = sbr.rel (0) target = $region33
    $region32: #{node_emb_forward.1} parent=1 // pred_region
      %40 = dma.done [#allocation3], 2048
    $region33: #{node_emb_forward.1} parent=1 // pred_fallthru
      _
    %v41 = vld [vmem:[%s0] sm:$0xff]
    %v42 = vld [vmem:[%s0 + $0x8] sm:$0xff]
    %v43 = vld [vmem:[%s1] sm:$0xff]
    %v44 = vld [vmem:[%s1 + $0x8] sm:$0xff]
    %v45 = vld [vmem:[%s1 + $0x10] sm:$0xff]
    %v46 = vld [vmem:[%s2] sm:$0xff]
    %v47 = vld [vmem:[%s2 + $0x8] sm:$0xff]
    %v48 = vld [vmem:[%s2 + $0x10] sm:$0xff]
    %v49 = vld [vmem:[#allocation2] sm:$0xff]
    %v50 = vld [vmem:[#allocation2 + $0x8] sm:$0xff]
    %v51 = vld [vmem:[#allocation2 + $0x10] sm:$0xff]
    %v52 = vld [vmem:[#allocation2 + $0x18] sm:$0xff]
    %v53 = vld [vmem:[#allocation2 + $0x20] sm:$0xff]
    %v54 = vld [vmem:[#allocation2 + $0x28] sm:$0xff]
    %v55 = vld [vmem:[#allocation2 + $0x30] sm:$0xff]
    %v56 = vld [vmem:[#allocation2 + $0x38] sm:$0xff]
    %vm57 = vcmask 261120
    %v59 = vsel %vm57, %v41, 0
    %v62 = vsel %vm57, %v42, 0
    %64 = vmatprep.subr.mxu0 0.0
    %65 = vmatpush1.msra.mxu0 0.0
    %66 = vmatprep.subr.mxu0 0.0
    %67 = vmatpush1.msra.mxu0 0.0
    %68 = vmatprep.subr.mxu0 0.0
    %69 = vmatpush1.msra.mxu0 0.0
    %70 = vmatprep.subr.mxu0 0.0
    %71 = vmatpush1.msra.mxu0 0.0
    %72 = vmatprep.subr.mxu0 0.0
    %73 = vmatpush1.msra.mxu0 0.0
    %74 = vmatprep.subr.mxu0 0.0
    %75 = vmatpush1.msra.mxu0 0.0
    %76 = vmatprep.subr.mxu0 0.0
    %77 = vmatpush1.msra.mxu0 0.0
    %78 = vmatprep.subr.mxu0 0.0
    %79 = vmatpush1.msra.mxu0 0.0
    %80 = vmatprep.subr.mxu0 0.0
    %81 = vmatpush1.msra.mxu0 0.0
    %82 = vmatprep.subr.mxu0 0.0
    %83 = vmatpush1.msra.mxu0 0.0
    %84 = vmatprep.subr.mxu0 0.0
    %85 = vmatpush1.msra.mxu0 0.0
    %86 = vmatprep.subr.mxu0 0.0
    %87 = vmatpush1.msra.mxu0 0.0
    %88 = vmatprep.subr.mxu0 %v56
    %89 = vmatpush1.msra.mxu0 %v55
    %90 = vmatprep.subr.mxu0 %v54
    %91 = vmatpush1.msra.mxu0 %v53
    %92 = vmatprep.subr.mxu0 %v52
    %93 = vmatpush1.msra.mxu0 %v51
    %94 = vmatprep.subr.mxu0 %v50
    %95 = vmatpush1.msra.mxu0 %v49
    %96 = vmatprep.subr.mxu0 0.0
    %97 = vmatpush2.msra.mxu0 0.0
    %98 = vmatprep.subr.mxu0 0.0
    %99 = vmatpush2.msra.mxu0 0.0
    %100 = vmatprep.subr.mxu0 0.0
    %101 = vmatpush2.msra.mxu0 0.0
    %102 = vmatprep.subr.mxu0 0.0
    %103 = vmatpush2.msra.mxu0 0.0
    %104 = vmatprep.subr.mxu0 0.0
    %105 = vmatpush2.msra.mxu0 0.0
    %106 = vmatprep.subr.mxu0 0.0
    %107 = vmatpush2.msra.mxu0 0.0
    %108 = vmatprep.subr.mxu0 0.0
    %109 = vmatpush2.msra.mxu0 0.0
    %110 = vmatprep.subr.mxu0 0.0
    %111 = vmatpush2.msra.mxu0 0.0
    %112 = vmatprep.subr.mxu0 0.0
    %113 = vmatpush2.msra.mxu0 0.0
    %114 = vmatprep.subr.mxu0 0.0
    %115 = vmatpush2.msra.mxu0 0.0
    %116 = vmatprep.subr.mxu0 0.0
    %117 = vmatpush2.msra.mxu0 0.0
    %118 = vmatprep.subr.mxu0 0.0
    %119 = vmatpush2.msra.mxu0 0.0
    %120 = vmatprep.subr.mxu0 0.0
    %121 = vmatpush2.msra.mxu0 0.0
    %122 = vmatprep.subr.mxu0 0.0
    %123 = vmatpush2.msra.mxu0 0.0
    %124 = vmatprep.subr.mxu0 0.0
    %125 = vmatpush2.msra.mxu0 0.0
    %126 = vmatprep.subr.mxu0 0.0
    %127 = vmatpush2.msra.mxu0 0.0
    %128 = vmatprep.mubr.f32.mxu0 0.0
    %129 = vmatmul.mubr.f32.gmra.mxu0 %v59
    %v130 = vpop.f32.mrf.mxu0
    %v131 = vadd.f32 0.0, %v130
    %v132 = vpop.f32.mrf.mxu0
    %v133 = vadd.f32 0.0, %v132
    %134 = vmatprep.mubr.f32.mxu0 0.0
    %135 = vmatmul.mubr.f32.gmra.mxu0 %v62
    %v136 = vpop.f32.mrf.mxu0
    %v137 = vadd.f32 0.0, %v136
    %v138 = vpop.f32.mrf.mxu0
    %v139 = vadd.f32 0.0, %v138
    %140 = vdwg.mxu0
    %vm141 = vcmask 130048
    %v143 = vsel %vm141, %v46, 0
    %v146 = vsel %vm141, %v47, 0
    %v149 = vsel %vm141, %v48, 0
    %151 = vmatprep.subr.mxu0 0.0
    %152 = vmatpush1.msra.mxu0 0.0
    %153 = vmatprep.subr.mxu0 0.0
    %154 = vmatpush1.msra.mxu0 0.0
    %155 = vmatprep.subr.mxu0 0.0
    %156 = vmatpush1.msra.mxu0 0.0
    %157 = vmatprep.subr.mxu0 0.0
    %158 = vmatpush1.msra.mxu0 0.0
    %159 = vmatprep.subr.mxu0 0.0
    %160 = vmatpush1.msra.mxu0 0.0
    %161 = vmatprep.subr.mxu0 0.0
    %162 = vmatpush1.msra.mxu0 0.0
    %163 = vmatprep.subr.mxu0 0.0
    %164 = vmatpush1.msra.mxu0 0.0
    %165 = vmatprep.subr.mxu0 0.0
    %166 = vmatpush1.msra.mxu0 0.0
    %167 = vmatprep.subr.mxu0 0.0
    %168 = vmatpush1.msra.mxu0 0.0
    %169 = vmatprep.subr.mxu0 0.0
    %170 = vmatpush1.msra.mxu0 0.0
    %171 = vmatprep.subr.mxu0 0.0
    %172 = vmatpush1.msra.mxu0 0.0
    %173 = vmatprep.subr.mxu0 0.0
    %174 = vmatpush1.msra.mxu0 0.0
    %175 = vmatprep.subr.mxu0 0.0
    %176 = vmatpush1.msra.mxu0 0.0
    %177 = vmatprep.subr.mxu0 0.0
    %178 = vmatpush1.msra.mxu0 0.0
    %179 = vmatprep.subr.mxu0 0.0
    %180 = vmatpush1.msra.mxu0 %v139
    %181 = vmatprep.subr.mxu0 0.0
    %182 = vmatpush1.msra.mxu0 %v133
    %183 = vmatprep.subr.mxu0 0.0
    %184 = vmatpush2.msra.mxu0 0.0
    %185 = vmatprep.subr.mxu0 0.0
    %186 = vmatpush2.msra.mxu0 0.0
    %187 = vmatprep.subr.mxu0 0.0
    %188 = vmatpush2.msra.mxu0 0.0
    %189 = vmatprep.subr.mxu0 0.0
    %190 = vmatpush2.msra.mxu0 0.0
    %191 = vmatprep.subr.mxu0 0.0
    %192 = vmatpush2.msra.mxu0 0.0
    %193 = vmatprep.subr.mxu0 0.0
    %194 = vmatpush2.msra.mxu0 0.0
    %195 = vmatprep.subr.mxu0 0.0
    %196 = vmatpush2.msra.mxu0 0.0
    %197 = vmatprep.subr.mxu0 0.0
    %198 = vmatpush2.msra.mxu0 0.0
    %199 = vmatprep.subr.mxu0 0.0
    %200 = vmatpush2.msra.mxu0 0.0
    %201 = vmatprep.subr.mxu0 0.0
    %202 = vmatpush2.msra.mxu0 0.0
    %203 = vmatprep.subr.mxu0 0.0
    %204 = vmatpush2.msra.mxu0 0.0
    %205 = vmatprep.subr.mxu0 0.0
    %206 = vmatpush2.msra.mxu0 0.0
    %207 = vmatprep.subr.mxu0 0.0
    %208 = vmatpush2.msra.mxu0 0.0
    %209 = vmatprep.subr.mxu0 0.0
    %210 = vmatpush2.msra.mxu0 0.0
    %211 = vmatprep.subr.mxu0 0.0
    %212 = vmatpush2.msra.mxu0 0.0
    %213 = vmatprep.subr.mxu0 0.0
    %214 = vmatpush2.msra.mxu0 0.0
    %215 = vmatprep.mubr.f32.mxu0 0.0
    %216 = vmatmul.mubr.f32.gmra.mxu0 %v143
    %v217 = vpop.f32.mrf.mxu0
    %v218 = vadd.f32 0.0, %v217
    %v219 = vpop.f32.mrf.mxu0
    %220 = vmatprep.mubr.f32.mxu0 0.0
    %221 = vmatmul.mubr.f32.gmra.mxu0 %v146
    %v222 = vpop.f32.mrf.mxu0
    %v223 = vadd.f32 0.0, %v222
    %v224 = vpop.f32.mrf.mxu0
    %225 = vmatprep.mubr.f32.mxu0 0.0
    %226 = vmatmul.mubr.f32.gmra.mxu0 %v149
    %v227 = vpop.f32.mrf.mxu0
    %v228 = vadd.f32 0.0, %v227
    %v229 = vpop.f32.mrf.mxu0
    %230 = vdwg.mxu0
    %v232 = vsel %vm141, %v43, 0
    %v235 = vsel %vm141, %v44, 0
    %v238 = vsel %vm141, %v45, 0
    %240 = vmatprep.subr.mxu0 0.0
    %241 = vmatpush1.msra.mxu0 0.0
    %242 = vmatprep.subr.mxu0 0.0
    %243 = vmatpush1.msra.mxu0 0.0
    %244 = vmatprep.subr.mxu0 0.0
    %245 = vmatpush1.msra.mxu0 0.0
    %246 = vmatprep.subr.mxu0 0.0
    %247 = vmatpush1.msra.mxu0 0.0
    %248 = vmatprep.subr.mxu0 0.0
    %249 = vmatpush1.msra.mxu0 0.0
    %250 = vmatprep.subr.mxu0 0.0
    %251 = vmatpush1.msra.mxu0 0.0
    %252 = vmatprep.subr.mxu0 0.0
    %253 = vmatpush1.msra.mxu0 0.0
    %254 = vmatprep.subr.mxu0 0.0
    %255 = vmatpush1.msra.mxu0 0.0
    %256 = vmatprep.subr.mxu0 0.0
    %257 = vmatpush1.msra.mxu0 0.0
    %258 = vmatprep.subr.mxu0 0.0
    %259 = vmatpush1.msra.mxu0 0.0
    %260 = vmatprep.subr.mxu0 0.0
    %261 = vmatpush1.msra.mxu0 0.0
    %262 = vmatprep.subr.mxu0 0.0
    %263 = vmatpush1.msra.mxu0 0.0
    %264 = vmatprep.subr.mxu0 0.0
    %265 = vmatpush1.msra.mxu0 0.0
    %266 = vmatprep.subr.mxu0 0.0
    %267 = vmatpush1.msra.mxu0 0.0
    %268 = vmatprep.subr.mxu0 0.0
    %269 = vmatpush1.msra.mxu0 %v137
    %270 = vmatprep.subr.mxu0 0.0
    %271 = vmatpush1.msra.mxu0 %v131
    %272 = vmatprep.subr.mxu0 0.0
    %273 = vmatpush2.msra.mxu0 0.0
    %274 = vmatprep.subr.mxu0 0.0
    %275 = vmatpush2.msra.mxu0 0.0
    %276 = vmatprep.subr.mxu0 0.0
    %277 = vmatpush2.msra.mxu0 0.0
    %278 = vmatprep.subr.mxu0 0.0
    %279 = vmatpush2.msra.mxu0 0.0
    %280 = vmatprep.subr.mxu0 0.0
    %281 = vmatpush2.msra.mxu0 0.0
    %282 = vmatprep.subr.mxu0 0.0
    %283 = vmatpush2.msra.mxu0 0.0
    %284 = vmatprep.subr.mxu0 0.0
    %285 = vmatpush2.msra.mxu0 0.0
    %286 = vmatprep.subr.mxu0 0.0
    %287 = vmatpush2.msra.mxu0 0.0
    %288 = vmatprep.subr.mxu0 0.0
    %289 = vmatpush2.msra.mxu0 0.0
    %290 = vmatprep.subr.mxu0 0.0
    %291 = vmatpush2.msra.mxu0 0.0
    %292 = vmatprep.subr.mxu0 0.0
    %293 = vmatpush2.msra.mxu0 0.0
    %294 = vmatprep.subr.mxu0 0.0
    %295 = vmatpush2.msra.mxu0 0.0
    %296 = vmatprep.subr.mxu0 0.0
    %297 = vmatpush2.msra.mxu0 0.0
    %298 = vmatprep.subr.mxu0 0.0
    %299 = vmatpush2.msra.mxu0 0.0
    %300 = vmatprep.subr.mxu0 0.0
    %301 = vmatpush2.msra.mxu0 0.0
    %302 = vmatprep.subr.mxu0 0.0
    %303 = vmatpush2.msra.mxu0 0.0
    %304 = vmatprep.mubr.f32.mxu0 0.0
    %305 = vmatmul.mubr.f32.gmra.mxu0 %v232
    %v306 = vpop.f32.mrf.mxu0
    %v307 = vadd.f32 %v218, %v306
    %v308 = vpop.f32.mrf.mxu0
    %309 = vmatprep.mubr.f32.mxu0 0.0
    %310 = vmatmul.mubr.f32.gmra.mxu0 %v235
    %v311 = vpop.f32.mrf.mxu0
    %v312 = vadd.f32 %v223, %v311
    %v313 = vpop.f32.mrf.mxu0
    %314 = vmatprep.mubr.f32.mxu0 0.0
    %315 = vmatmul.mubr.f32.gmra.mxu0 %v238
    %v316 = vpop.f32.mrf.mxu0
    %v317 = vadd.f32 %v228, %v316
    %v318 = vpop.f32.mrf.mxu0
    %319 = vdwg.mxu0
    %v320 = vld [vmem:[%s4] sm:$0x1]
    %v322 = vlaneseq
    %v323 = vshrl.u32 %v322, 7
    %v324 = vsub.s32 0, %v323
    %v325 = vrot.slane %v320, %v324
    %v327 = vadd.f32 %v307, %v325
    %v328 = vadd.f32 %v312, %v325
    %v329 = vadd.f32 %v317, %v325
    %330 = vxpose.xlu0.b32.start [1/16] %v43, 128
    %331 = vxpose.xlu0.b32.cont [2/16] %v44, 128
    %332 = vxpose.xlu0.b32.cont [3/16] %v45, 128
    %333 = vxpose.xlu0.b32.cont [4/16] 0.0, 128
    %334 = vxpose.xlu0.b32.cont [5/16] 0.0, 128
    %335 = vxpose.xlu0.b32.cont [6/16] 0.0, 128
    %336 = vxpose.xlu0.b32.cont [7/16] 0.0, 128
    %337 = vxpose.xlu0.b32.cont [8/16] 0.0, 128
    %338 = vxpose.xlu0.b32.cont [9/16] 0.0, 128
    %339 = vxpose.xlu0.b32.cont [10/16] 0.0, 128
    %340 = vxpose.xlu0.b32.cont [11/16] 0.0, 128
    %341 = vxpose.xlu0.b32.cont [12/16] 0.0, 128
    %342 = vxpose.xlu0.b32.cont [13/16] 0.0, 128
    %343 = vxpose.xlu0.b32.cont [14/16] 0.0, 128
    %344 = vxpose.xlu0.b32.cont [15/16] 0.0, 128
    %345 = vxpose.xlu0.b32.end [16/16] 0.0, 128
    %v346 = vpop.trf.xlu0
    %v347 = vpop.trf.xlu0
    %v348 = vpop.trf.xlu0
    %v349 = vpop.trf.xlu0
    %v350 = vpop.trf.xlu0
    %v351 = vpop.trf.xlu0
    %v352 = vpop.trf.xlu0
    %v353 = vpop.trf.xlu0
    %v354 = vpop.trf.xlu0
    %v355 = vpop.trf.xlu0
    %v356 = vpop.trf.xlu0
    %v357 = vpop.trf.xlu0
    %v358 = vpop.trf.xlu0
    %v359 = vpop.trf.xlu0
    %v360 = vpop.trf.xlu0
    %v361 = vpop.trf.xlu0
    %365 = vrot.lane.b32.xlu0 %v327, 64
    %v366 = vpop.permute.xlu0 %365
    %367 = vrot.lane.b32.xlu0 %v328, 64
    %v368 = vpop.permute.xlu0 %367
    %369 = vrot.lane.b32.xlu0 %v329, 64
    %v370 = vpop.permute.xlu0 %369
    %vm374 = vcmask 195584
    %v376 = vsel %vm374, %v346, 0
    %v379 = vsel %vm374, %v347, 0
    %381 = vmatprep.subr.mxu0 0.0
    %382 = vmatpush1.msra.mxu0 0.0
    %383 = vmatprep.subr.mxu0 0.0
    %384 = vmatpush1.msra.mxu0 0.0
    %385 = vmatprep.subr.mxu0 0.0
    %386 = vmatpush1.msra.mxu0 0.0
    %387 = vmatprep.subr.mxu0 0.0
    %388 = vmatpush1.msra.mxu0 0.0
    %389 = vmatprep.subr.mxu0 0.0
    %390 = vmatpush1.msra.mxu0 0.0
    %391 = vmatprep.subr.mxu0 0.0
    %392 = vmatpush1.msra.mxu0 0.0
    %393 = vmatprep.subr.mxu0 0.0
    %394 = vmatpush1.msra.mxu0 0.0
    %395 = vmatprep.subr.mxu0 0.0
    %396 = vmatpush1.msra.mxu0 0.0
    %397 = vmatprep.subr.mxu0 0.0
    %398 = vmatpush1.msra.mxu0 0.0
    %399 = vmatprep.subr.mxu0 0.0
    %400 = vmatpush1.msra.mxu0 0.0
    %401 = vmatprep.subr.mxu0 0.0
    %402 = vmatpush1.msra.mxu0 0.0
    %403 = vmatprep.subr.mxu0 0.0
    %404 = vmatpush1.msra.mxu0 0.0
    %405 = vmatprep.subr.mxu0 0.0
    %406 = vmatpush1.msra.mxu0 0.0
    %407 = vmatprep.subr.mxu0 0.0
    %408 = vmatpush1.msra.mxu0 %v370
    %409 = vmatprep.subr.mxu0 0.0
    %410 = vmatpush1.msra.mxu0 %v368
    %411 = vmatprep.subr.mxu0 0.0
    %412 = vmatpush1.msra.mxu0 %v366
    %413 = vmatprep.subr.mxu0 0.0
    %414 = vmatpush2.msra.mxu0 0.0
    %415 = vmatprep.subr.mxu0 0.0
    %416 = vmatpush2.msra.mxu0 0.0
    %417 = vmatprep.subr.mxu0 0.0
    %418 = vmatpush2.msra.mxu0 0.0
    %419 = vmatprep.subr.mxu0 0.0
    %420 = vmatpush2.msra.mxu0 0.0
    %421 = vmatprep.subr.mxu0 0.0
    %422 = vmatpush2.msra.mxu0 0.0
    %423 = vmatprep.subr.mxu0 0.0
    %424 = vmatpush2.msra.mxu0 0.0
    %425 = vmatprep.subr.mxu0 0.0
    %426 = vmatpush2.msra.mxu0 0.0
    %427 = vmatprep.subr.mxu0 0.0
    %428 = vmatpush2.msra.mxu0 0.0
    %429 = vmatprep.subr.mxu0 0.0
    %430 = vmatpush2.msra.mxu0 0.0
    %431 = vmatprep.subr.mxu0 0.0
    %432 = vmatpush2.msra.mxu0 0.0
    %433 = vmatprep.subr.mxu0 0.0
    %434 = vmatpush2.msra.mxu0 0.0
    %435 = vmatprep.subr.mxu0 0.0
    %436 = vmatpush2.msra.mxu0 0.0
    %437 = vmatprep.subr.mxu0 0.0
    %438 = vmatpush2.msra.mxu0 0.0
    %439 = vmatprep.subr.mxu0 0.0
    %440 = vmatpush2.msra.mxu0 0.0
    %441 = vmatprep.subr.mxu0 0.0
    %442 = vmatpush2.msra.mxu0 0.0
    %443 = vmatprep.subr.mxu0 0.0
    %444 = vmatpush2.msra.mxu0 0.0
    %445 = vmatprep.mubr.f32.mxu0 0.0
    %446 = vmatmul.mubr.f32.gmra.mxu0 %v376
    %v447 = vpop.f32.mrf.mxu0
    %v448 = vadd.f32 0.0, %v447
    %v449 = vpop.f32.mrf.mxu0
    %450 = vmatprep.mubr.f32.mxu0 0.0
    %451 = vmatmul.mubr.f32.gmra.mxu0 %v379
    %v452 = vpop.f32.mrf.mxu0
    %v453 = vadd.f32 0.0, %v452
    %v454 = vpop.f32.mrf.mxu0
    %455 = vdwg.mxu0
    %456 = vxpose.xlu0.b32.start [1/16] %v46, 128
    %457 = vxpose.xlu0.b32.cont [2/16] %v47, 128
    %458 = vxpose.xlu0.b32.cont [3/16] %v48, 128
    %459 = vxpose.xlu0.b32.cont [4/16] 0.0, 128
    %460 = vxpose.xlu0.b32.cont [5/16] 0.0, 128
    %461 = vxpose.xlu0.b32.cont [6/16] 0.0, 128
    %462 = vxpose.xlu0.b32.cont [7/16] 0.0, 128
    %463 = vxpose.xlu0.b32.cont [8/16] 0.0, 128
    %464 = vxpose.xlu0.b32.cont [9/16] 0.0, 128
    %465 = vxpose.xlu0.b32.cont [10/16] 0.0, 128
    %466 = vxpose.xlu0.b32.cont [11/16] 0.0, 128
    %467 = vxpose.xlu0.b32.cont [12/16] 0.0, 128
    %468 = vxpose.xlu0.b32.cont [13/16] 0.0, 128
    %469 = vxpose.xlu0.b32.cont [14/16] 0.0, 128
    %470 = vxpose.xlu0.b32.cont [15/16] 0.0, 128
    %471 = vxpose.xlu0.b32.end [16/16] 0.0, 128
    %v472 = vpop.trf.xlu0
    %v473 = vpop.trf.xlu0
    %v474 = vpop.trf.xlu0
    %v475 = vpop.trf.xlu0
    %v476 = vpop.trf.xlu0
    %v477 = vpop.trf.xlu0
    %v478 = vpop.trf.xlu0
    %v479 = vpop.trf.xlu0
    %v480 = vpop.trf.xlu0
    %v481 = vpop.trf.xlu0
    %v482 = vpop.trf.xlu0
    %v483 = vpop.trf.xlu0
    %v484 = vpop.trf.xlu0
    %v485 = vpop.trf.xlu0
    %v486 = vpop.trf.xlu0
    %v487 = vpop.trf.xlu0
    %v489 = vsel %vm374, %v472, 0
    %v492 = vsel %vm374, %v473, 0
    %494 = vmatprep.subr.mxu0 0.0
    %495 = vmatpush1.msra.mxu0 0.0
    %496 = vmatprep.subr.mxu0 0.0
    %497 = vmatpush1.msra.mxu0 0.0
    %498 = vmatprep.subr.mxu0 0.0
    %499 = vmatpush1.msra.mxu0 0.0
    %500 = vmatprep.subr.mxu0 0.0
    %501 = vmatpush1.msra.mxu0 0.0
    %502 = vmatprep.subr.mxu0 0.0
    %503 = vmatpush1.msra.mxu0 0.0
    %504 = vmatprep.subr.mxu0 0.0
    %505 = vmatpush1.msra.mxu0 0.0
    %506 = vmatprep.subr.mxu0 0.0
    %507 = vmatpush1.msra.mxu0 0.0
    %508 = vmatprep.subr.mxu0 0.0
    %509 = vmatpush1.msra.mxu0 0.0
    %510 = vmatprep.subr.mxu0 0.0
    %511 = vmatpush1.msra.mxu0 0.0
    %512 = vmatprep.subr.mxu0 0.0
    %513 = vmatpush1.msra.mxu0 0.0
    %514 = vmatprep.subr.mxu0 0.0
    %515 = vmatpush1.msra.mxu0 0.0
    %516 = vmatprep.subr.mxu0 0.0
    %517 = vmatpush1.msra.mxu0 0.0
    %518 = vmatprep.subr.mxu0 0.0
    %519 = vmatpush1.msra.mxu0 0.0
    %520 = vmatprep.subr.mxu0 0.0
    %521 = vmatpush1.msra.mxu0 %v329
    %522 = vmatprep.subr.mxu0 0.0
    %523 = vmatpush1.msra.mxu0 %v328
    %524 = vmatprep.subr.mxu0 0.0
    %525 = vmatpush1.msra.mxu0 %v327
    %526 = vmatprep.subr.mxu0 0.0
    %527 = vmatpush2.msra.mxu0 0.0
    %528 = vmatprep.subr.mxu0 0.0
    %529 = vmatpush2.msra.mxu0 0.0
    %530 = vmatprep.subr.mxu0 0.0
    %531 = vmatpush2.msra.mxu0 0.0
    %532 = vmatprep.subr.mxu0 0.0
    %533 = vmatpush2.msra.mxu0 0.0
    %534 = vmatprep.subr.mxu0 0.0
    %535 = vmatpush2.msra.mxu0 0.0
    %536 = vmatprep.subr.mxu0 0.0
    %537 = vmatpush2.msra.mxu0 0.0
    %538 = vmatprep.subr.mxu0 0.0
    %539 = vmatpush2.msra.mxu0 0.0
    %540 = vmatprep.subr.mxu0 0.0
    %541 = vmatpush2.msra.mxu0 0.0
    %542 = vmatprep.subr.mxu0 0.0
    %543 = vmatpush2.msra.mxu0 0.0
    %544 = vmatprep.subr.mxu0 0.0
    %545 = vmatpush2.msra.mxu0 0.0
    %546 = vmatprep.subr.mxu0 0.0
    %547 = vmatpush2.msra.mxu0 0.0
    %548 = vmatprep.subr.mxu0 0.0
    %549 = vmatpush2.msra.mxu0 0.0
    %550 = vmatprep.subr.mxu0 0.0
    %551 = vmatpush2.msra.mxu0 0.0
    %552 = vmatprep.subr.mxu0 0.0
    %553 = vmatpush2.msra.mxu0 0.0
    %554 = vmatprep.subr.mxu0 0.0
    %555 = vmatpush2.msra.mxu0 0.0
    %556 = vmatprep.subr.mxu0 0.0
    %557 = vmatpush2.msra.mxu0 0.0
    %558 = vmatprep.mubr.f32.mxu0 0.0
    %559 = vmatmul.mubr.f32.gmra.mxu0 %v489
    %v560 = vpop.f32.mrf.mxu0
    %v561 = vadd.f32 %v448, %v560
    %v562 = vpop.f32.mrf.mxu0
    %563 = vmatprep.mubr.f32.mxu0 0.0
    %564 = vmatmul.mubr.f32.gmra.mxu0 %v492
    %v565 = vpop.f32.mrf.mxu0
    %v566 = vadd.f32 %v453, %v565
    %v567 = vpop.f32.mrf.mxu0
    %568 = vdwg.mxu0
    %569 = vrot.lane.b32.xlu0 %v41, 64
    %v570 = vpop.permute.xlu0 %569
    %571 = vrot.lane.b32.xlu0 %v42, 64
    %v572 = vpop.permute.xlu0 %571
    %vm575 = vcmask 523264
    %v576 = vsel %vm575, %v561, %v570
    %v577 = vsel %vm575, %v566, %v572
    %v578 = vld [vmem:[%s5] sm:$0xff]
    %v579 = vld [vmem:[%s5 + $0x8] sm:$0xff]
    %v580 = vld [vmem:[%s5 + $0x10] sm:$0xff]
    %v581 = vld [vmem:[%s5 + $0x18] sm:$0xff]
    %v582 = vld [vmem:[%s5 + $0x20] sm:$0xff]
    %v583 = vld [vmem:[%s5 + $0x28] sm:$0xff]
    %v584 = vld [vmem:[%s5 + $0x30] sm:$0xff]
    %v585 = vld [vmem:[%s5 + $0x38] sm:$0xff]
    %v586 = vld [vmem:[%s5 + $0x40] sm:$0xff]
    %v587 = vld [vmem:[%s5 + $0x48] sm:$0xff]
    %v588 = vld [vmem:[%s5 + $0x50] sm:$0xff]
    %v589 = vld [vmem:[%s5 + $0x58] sm:$0xff]
    %v590 = vld [vmem:[%s6] sm:$0x1]
    %v592 = vlaneseq
    %v593 = vshrl.u32 %v592, 7
    %v594 = vsub.s32 0, %v593
    %v595 = vrot.slane %v590, %v594
    %vm597 = vcmask 785408
    %v599 = vsel %vm597, %v576, 0
    %v602 = vsel %vm597, %v577, 0
    %604 = vmatprep.subr.mxu0 0.0
    %605 = vmatpush1.msra.mxu0 0.0
    %606 = vmatprep.subr.mxu0 0.0
    %607 = vmatpush1.msra.mxu0 0.0
    %608 = vmatprep.subr.mxu0 0.0
    %609 = vmatpush1.msra.mxu0 0.0
    %610 = vmatprep.subr.mxu0 0.0
    %611 = vmatpush1.msra.mxu0 0.0
    %612 = vmatprep.subr.mxu0 0.0
    %613 = vmatpush1.msra.mxu0 %v589
    %614 = vmatprep.subr.mxu0 0.0
    %615 = vmatpush1.msra.mxu0 %v588
    %616 = vmatprep.subr.mxu0 0.0
    %617 = vmatpush1.msra.mxu0 %v587
    %618 = vmatprep.subr.mxu0 0.0
    %619 = vmatpush1.msra.mxu0 %v586
    %620 = vmatprep.subr.mxu0 0.0
    %621 = vmatpush1.msra.mxu0 %v585
    %622 = vmatprep.subr.mxu0 0.0
    %623 = vmatpush1.msra.mxu0 %v584
    %624 = vmatprep.subr.mxu0 0.0
    %625 = vmatpush1.msra.mxu0 %v583
    %626 = vmatprep.subr.mxu0 0.0
    %627 = vmatpush1.msra.mxu0 %v582
    %628 = vmatprep.subr.mxu0 0.0
    %629 = vmatpush1.msra.mxu0 %v581
    %630 = vmatprep.subr.mxu0 0.0
    %631 = vmatpush1.msra.mxu0 %v580
    %632 = vmatprep.subr.mxu0 0.0
    %633 = vmatpush1.msra.mxu0 %v579
    %634 = vmatprep.subr.mxu0 0.0
    %635 = vmatpush1.msra.mxu0 %v578
    %636 = vmatprep.subr.mxu0 0.0
    %637 = vmatpush2.msra.mxu0 0.0
    %638 = vmatprep.subr.mxu0 0.0
    %639 = vmatpush2.msra.mxu0 0.0
    %640 = vmatprep.subr.mxu0 0.0
    %641 = vmatpush2.msra.mxu0 0.0
    %642 = vmatprep.subr.mxu0 0.0
    %643 = vmatpush2.msra.mxu0 0.0
    %644 = vmatprep.subr.mxu0 0.0
    %645 = vmatpush2.msra.mxu0 0.0
    %646 = vmatprep.subr.mxu0 0.0
    %647 = vmatpush2.msra.mxu0 0.0
    %648 = vmatprep.subr.mxu0 0.0
    %649 = vmatpush2.msra.mxu0 0.0
    %650 = vmatprep.subr.mxu0 0.0
    %651 = vmatpush2.msra.mxu0 0.0
    %652 = vmatprep.subr.mxu0 0.0
    %653 = vmatpush2.msra.mxu0 0.0
    %654 = vmatprep.subr.mxu0 0.0
    %655 = vmatpush2.msra.mxu0 0.0
    %656 = vmatprep.subr.mxu0 0.0
    %657 = vmatpush2.msra.mxu0 0.0
    %658 = vmatprep.subr.mxu0 0.0
    %659 = vmatpush2.msra.mxu0 0.0
    %660 = vmatprep.subr.mxu0 0.0
    %661 = vmatpush2.msra.mxu0 0.0
    %662 = vmatprep.subr.mxu0 0.0
    %663 = vmatpush2.msra.mxu0 0.0
    %664 = vmatprep.subr.mxu0 0.0
    %665 = vmatpush2.msra.mxu0 0.0
    %666 = vmatprep.subr.mxu0 0.0
    %667 = vmatpush2.msra.mxu0 0.0
    %668 = vmatprep.mubr.f32.mxu0 0.0
    %669 = vmatmul.mubr.f32.gmra.mxu0 %v599
    %v670 = vpop.f32.mrf.mxu0
    %v671 = vadd.f32 %v595, %v670
    %v672 = vpop.f32.mrf.mxu0
    %673 = vmatprep.mubr.f32.mxu0 0.0
    %674 = vmatmul.mubr.f32.gmra.mxu0 %v602
    %v675 = vpop.f32.mrf.mxu0
    %v676 = vadd.f32 %v595, %v675
    %v677 = vpop.f32.mrf.mxu0
    %678 = vdwg.mxu0
    %v679 = vxor.u32 %v671, 2147483648
    %v680 = vxor.u32 %v676, 2147483648
    %v681 = vmul.f32 %v679, 1.442695
    %v682 = vpow.pop %v681
    %v683 = vmul.f32 %v680, 1.442695
    %v684 = vpow.pop %v683
    %v685 = vadd.f32 %v682, 1.0
    %v686 = vadd.f32 %v684, 1.0
    %v687 = vrcp.pop %v685
    %v688 = vmul.f32 1.0, %v687
    %v689 = vrcp.pop %v686
    %v690 = vmul.f32 1.0, %v689
    %693 = vrot.lane.b32.xlu0 %v671, 32
    %v694 = vpop.permute.xlu0 %693
    %695 = vrot.lane.b32.xlu0 %v676, 32
    %v696 = vpop.permute.xlu0 %695
    %v699 = vmul.f32 %v688, %v694
    %v700 = vmul.f32 %v690, %v696
    %703 = vrot.lane.b32.xlu0 %v699, 64
    %v704 = vpop.permute.xlu0 %703
    %705 = vrot.lane.b32.xlu0 %v700, 64
    %v706 = vpop.permute.xlu0 %705
    %v709 = vadd.f32 %v671, %v704
    %v710 = vadd.f32 %v676, %v706
    %v711 = vtanh.pop %v709
    %v712 = vtanh.pop %v710
    %v713 = vsub.f32 1.0, %v688
    %v714 = vsub.f32 1.0, %v690
    %717 = vrot.lane.b32.xlu0 %v711, 96
    %v718 = vpop.permute.xlu0 %717
    %719 = vrot.lane.b32.xlu0 %v712, 96
    %v720 = vpop.permute.xlu0 %719
    %v723 = vmul.f32 %v713, %v718
    %v724 = vmul.f32 %v714, %v720
    %725 = vrot.lane.b32.xlu0 %v41, 32
    %v726 = vpop.permute.xlu0 %725
    %727 = vrot.lane.b32.xlu0 %v42, 32
    %v728 = vpop.permute.xlu0 %727
    %v731 = vmul.f32 %v688, %v726
    %v732 = vmul.f32 %v690, %v728
    %v733 = vadd.f32 %v723, %v731
    %v734 = vadd.f32 %v724, %v732
    %s735 = scalar_lea.vmem [#allocation2], 64
    %v736 = vld [vmem:[%s735] sm:$0xff]
    %v737 = vld [vmem:[%s735 + $0x8] sm:$0xff]
    %v738 = vld [vmem:[%s735 + $0x10] sm:$0xff]
    %v739 = vld [vmem:[%s735 + $0x18] sm:$0xff]
    %v740 = vld [vmem:[%s735 + $0x20] sm:$0xff]
    %v741 = vld [vmem:[%s735 + $0x28] sm:$0xff]
    %v742 = vld [vmem:[%s735 + $0x30] sm:$0xff]
    %v743 = vld [vmem:[%s735 + $0x38] sm:$0xff]
    %746 = vrot.lane.b32.xlu0 %v733, 96
    %v747 = vpop.permute.xlu0 %746
    %748 = vrot.lane.b32.xlu0 %v734, 96
    %v749 = vpop.permute.xlu0 %748
    %v750 = vsel %vm57, %v747, 0
    %v752 = vsel %vm57, %v749, 0
    %754 = vmatprep.subr.mxu0 0.0
    %755 = vmatpush1.msra.mxu0 0.0
    %756 = vmatprep.subr.mxu0 0.0
    %757 = vmatpush1.msra.mxu0 0.0
    %758 = vmatprep.subr.mxu0 0.0
    %759 = vmatpush1.msra.mxu0 0.0
    %760 = vmatprep.subr.mxu0 0.0
    %761 = vmatpush1.msra.mxu0 0.0
    %762 = vmatprep.subr.mxu0 0.0
    %763 = vmatpush1.msra.mxu0 0.0
    %764 = vmatprep.subr.mxu0 0.0
    %765 = vmatpush1.msra.mxu0 0.0
    %766 = vmatprep.subr.mxu0 0.0
    %767 = vmatpush1.msra.mxu0 0.0
    %768 = vmatprep.subr.mxu0 0.0
    %769 = vmatpush1.msra.mxu0 0.0
    %770 = vmatprep.subr.mxu0 0.0
    %771 = vmatpush1.msra.mxu0 0.0
    %772 = vmatprep.subr.mxu0 0.0
    %773 = vmatpush1.msra.mxu0 0.0
    %774 = vmatprep.subr.mxu0 0.0
    %775 = vmatpush1.msra.mxu0 0.0
    %776 = vmatprep.subr.mxu0 0.0
    %777 = vmatpush1.msra.mxu0 0.0
    %778 = vmatprep.subr.mxu0 %v743
    %779 = vmatpush1.msra.mxu0 %v742
    %780 = vmatprep.subr.mxu0 %v741
    %781 = vmatpush1.msra.mxu0 %v740
    %782 = vmatprep.subr.mxu0 %v739
    %783 = vmatpush1.msra.mxu0 %v738
    %784 = vmatprep.subr.mxu0 %v737
    %785 = vmatpush1.msra.mxu0 %v736
    %786 = vmatprep.subr.mxu0 0.0
    %787 = vmatpush2.msra.mxu0 0.0
    %788 = vmatprep.subr.mxu0 0.0
    %789 = vmatpush2.msra.mxu0 0.0
    %790 = vmatprep.subr.mxu0 0.0
    %791 = vmatpush2.msra.mxu0 0.0
    %792 = vmatprep.subr.mxu0 0.0
    %793 = vmatpush2.msra.mxu0 0.0
    %794 = vmatprep.subr.mxu0 0.0
    %795 = vmatpush2.msra.mxu0 0.0
    %796 = vmatprep.subr.mxu0 0.0
    %797 = vmatpush2.msra.mxu0 0.0
    %798 = vmatprep.subr.mxu0 0.0
    %799 = vmatpush2.msra.mxu0 0.0
    %800 = vmatprep.subr.mxu0 0.0
    %801 = vmatpush2.msra.mxu0 0.0
    %802 = vmatprep.subr.mxu0 0.0
    %803 = vmatpush2.msra.mxu0 0.0
    %804 = vmatprep.subr.mxu0 0.0
    %805 = vmatpush2.msra.mxu0 0.0
    %806 = vmatprep.subr.mxu0 0.0
    %807 = vmatpush2.msra.mxu0 0.0
    %808 = vmatprep.subr.mxu0 0.0
    %809 = vmatpush2.msra.mxu0 0.0
    %810 = vmatprep.subr.mxu0 0.0
    %811 = vmatpush2.msra.mxu0 0.0
    %812 = vmatprep.subr.mxu0 0.0
    %813 = vmatpush2.msra.mxu0 0.0
    %814 = vmatprep.subr.mxu0 0.0
    %815 = vmatpush2.msra.mxu0 0.0
    %816 = vmatprep.subr.mxu0 0.0
    %817 = vmatpush2.msra.mxu0 0.0
    %818 = vmatprep.mubr.f32.mxu0 0.0
    %819 = vmatmul.mubr.f32.gmra.mxu0 %v750
    %v820 = vpop.f32.mrf.mxu0
    %v821 = vadd.f32 0.0, %v820
    %v822 = vpop.f32.mrf.mxu0
    %v823 = vadd.f32 0.0, %v822
    %824 = vmatprep.mubr.f32.mxu0 0.0
    %825 = vmatmul.mubr.f32.gmra.mxu0 %v752
    %v826 = vpop.f32.mrf.mxu0
    %v827 = vadd.f32 0.0, %v826
    %v828 = vpop.f32.mrf.mxu0
    %v829 = vadd.f32 0.0, %v828
    %830 = vdwg.mxu0
    %831 = vmatprep.subr.mxu0 0.0
    %832 = vmatpush1.msra.mxu0 0.0
    %833 = vmatprep.subr.mxu0 0.0
    %834 = vmatpush1.msra.mxu0 0.0
    %835 = vmatprep.subr.mxu0 0.0
    %836 = vmatpush1.msra.mxu0 0.0
    %837 = vmatprep.subr.mxu0 0.0
    %838 = vmatpush1.msra.mxu0 0.0
    %839 = vmatprep.subr.mxu0 0.0
    %840 = vmatpush1.msra.mxu0 0.0
    %841 = vmatprep.subr.mxu0 0.0
    %842 = vmatpush1.msra.mxu0 0.0
    %843 = vmatprep.subr.mxu0 0.0
    %844 = vmatpush1.msra.mxu0 0.0
    %845 = vmatprep.subr.mxu0 0.0
    %846 = vmatpush1.msra.mxu0 0.0
    %847 = vmatprep.subr.mxu0 0.0
    %848 = vmatpush1.msra.mxu0 0.0
    %849 = vmatprep.subr.mxu0 0.0
    %850 = vmatpush1.msra.mxu0 0.0
    %851 = vmatprep.subr.mxu0 0.0
    %852 = vmatpush1.msra.mxu0 0.0
    %853 = vmatprep.subr.mxu0 0.0
    %854 = vmatpush1.msra.mxu0 0.0
    %855 = vmatprep.subr.mxu0 0.0
    %856 = vmatpush1.msra.mxu0 0.0
    %857 = vmatprep.subr.mxu0 0.0
    %858 = vmatpush1.msra.mxu0 0.0
    %859 = vmatprep.subr.mxu0 0.0
    %860 = vmatpush1.msra.mxu0 %v829
    %861 = vmatprep.subr.mxu0 0.0
    %862 = vmatpush1.msra.mxu0 %v823
    %863 = vmatprep.subr.mxu0 0.0
    %864 = vmatpush2.msra.mxu0 0.0
    %865 = vmatprep.subr.mxu0 0.0
    %866 = vmatpush2.msra.mxu0 0.0
    %867 = vmatprep.subr.mxu0 0.0
    %868 = vmatpush2.msra.mxu0 0.0
    %869 = vmatprep.subr.mxu0 0.0
    %870 = vmatpush2.msra.mxu0 0.0
    %871 = vmatprep.subr.mxu0 0.0
    %872 = vmatpush2.msra.mxu0 0.0
    %873 = vmatprep.subr.mxu0 0.0
    %874 = vmatpush2.msra.mxu0 0.0
    %875 = vmatprep.subr.mxu0 0.0
    %876 = vmatpush2.msra.mxu0 0.0
    %877 = vmatprep.subr.mxu0 0.0
    %878 = vmatpush2.msra.mxu0 0.0
    %879 = vmatprep.subr.mxu0 0.0
    %880 = vmatpush2.msra.mxu0 0.0
    %881 = vmatprep.subr.mxu0 0.0
    %882 = vmatpush2.msra.mxu0 0.0
    %883 = vmatprep.subr.mxu0 0.0
    %884 = vmatpush2.msra.mxu0 0.0
    %885 = vmatprep.subr.mxu0 0.0
    %886 = vmatpush2.msra.mxu0 0.0
    %887 = vmatprep.subr.mxu0 0.0
    %888 = vmatpush2.msra.mxu0 0.0
    %889 = vmatprep.subr.mxu0 0.0
    %890 = vmatpush2.msra.mxu0 0.0
    %891 = vmatprep.subr.mxu0 0.0
    %892 = vmatpush2.msra.mxu0 0.0
    %893 = vmatprep.subr.mxu0 0.0
    %894 = vmatpush2.msra.mxu0 0.0
    %895 = vmatprep.mubr.f32.mxu0 0.0
    %896 = vmatmul.mubr.f32.gmra.mxu0 %v143
    %v897 = vpop.f32.mrf.mxu0
    %v898 = vadd.f32 0.0, %v897
    %v899 = vpop.f32.mrf.mxu0
    %900 = vmatprep.mubr.f32.mxu0 0.0
    %901 = vmatmul.mubr.f32.gmra.mxu0 %v146
    %v902 = vpop.f32.mrf.mxu0
    %v903 = vadd.f32 0.0, %v902
    %v904 = vpop.f32.mrf.mxu0
    %905 = vmatprep.mubr.f32.mxu0 0.0
    %906 = vmatmul.mubr.f32.gmra.mxu0 %v149
    %v907 = vpop.f32.mrf.mxu0
    %v908 = vadd.f32 0.0, %v907
    %v909 = vpop.f32.mrf.mxu0
    %910 = vdwg.mxu0
    %911 = vmatprep.subr.mxu0 0.0
    %912 = vmatpush1.msra.mxu0 0.0
    %913 = vmatprep.subr.mxu0 0.0
    %914 = vmatpush1.msra.mxu0 0.0
    %915 = vmatprep.subr.mxu0 0.0
    %916 = vmatpush1.msra.mxu0 0.0
    %917 = vmatprep.subr.mxu0 0.0
    %918 = vmatpush1.msra.mxu0 0.0
    %919 = vmatprep.subr.mxu0 0.0
    %920 = vmatpush1.msra.mxu0 0.0
    %921 = vmatprep.subr.mxu0 0.0
    %922 = vmatpush1.msra.mxu0 0.0
    %923 = vmatprep.subr.mxu0 0.0
    %924 = vmatpush1.msra.mxu0 0.0
    %925 = vmatprep.subr.mxu0 0.0
    %926 = vmatpush1.msra.mxu0 0.0
    %927 = vmatprep.subr.mxu0 0.0
    %928 = vmatpush1.msra.mxu0 0.0
    %929 = vmatprep.subr.mxu0 0.0
    %930 = vmatpush1.msra.mxu0 0.0
    %931 = vmatprep.subr.mxu0 0.0
    %932 = vmatpush1.msra.mxu0 0.0
    %933 = vmatprep.subr.mxu0 0.0
    %934 = vmatpush1.msra.mxu0 0.0
    %935 = vmatprep.subr.mxu0 0.0
    %936 = vmatpush1.msra.mxu0 0.0
    %937 = vmatprep.subr.mxu0 0.0
    %938 = vmatpush1.msra.mxu0 0.0
    %939 = vmatprep.subr.mxu0 0.0
    %940 = vmatpush1.msra.mxu0 %v827
    %941 = vmatprep.subr.mxu0 0.0
    %942 = vmatpush1.msra.mxu0 %v821
    %943 = vmatprep.subr.mxu0 0.0
    %944 = vmatpush2.msra.mxu0 0.0
    %945 = vmatprep.subr.mxu0 0.0
    %946 = vmatpush2.msra.mxu0 0.0
    %947 = vmatprep.subr.mxu0 0.0
    %948 = vmatpush2.msra.mxu0 0.0
    %949 = vmatprep.subr.mxu0 0.0
    %950 = vmatpush2.msra.mxu0 0.0
    %951 = vmatprep.subr.mxu0 0.0
    %952 = vmatpush2.msra.mxu0 0.0
    %953 = vmatprep.subr.mxu0 0.0
    %954 = vmatpush2.msra.mxu0 0.0
    %955 = vmatprep.subr.mxu0 0.0
    %956 = vmatpush2.msra.mxu0 0.0
    %957 = vmatprep.subr.mxu0 0.0
    %958 = vmatpush2.msra.mxu0 0.0
    %959 = vmatprep.subr.mxu0 0.0
    %960 = vmatpush2.msra.mxu0 0.0
    %961 = vmatprep.subr.mxu0 0.0
    %962 = vmatpush2.msra.mxu0 0.0
    %963 = vmatprep.subr.mxu0 0.0
    %964 = vmatpush2.msra.mxu0 0.0
    %965 = vmatprep.subr.mxu0 0.0
    %966 = vmatpush2.msra.mxu0 0.0
    %967 = vmatprep.subr.mxu0 0.0
    %968 = vmatpush2.msra.mxu0 0.0
    %969 = vmatprep.subr.mxu0 0.0
    %970 = vmatpush2.msra.mxu0 0.0
    %971 = vmatprep.subr.mxu0 0.0
    %972 = vmatpush2.msra.mxu0 0.0
    %973 = vmatprep.subr.mxu0 0.0
    %974 = vmatpush2.msra.mxu0 0.0
    %975 = vmatprep.mubr.f32.mxu0 0.0
    %976 = vmatmul.mubr.f32.gmra.mxu0 %v232
    %v977 = vpop.f32.mrf.mxu0
    %v978 = vadd.f32 %v898, %v977
    %v979 = vpop.f32.mrf.mxu0
    %980 = vmatprep.mubr.f32.mxu0 0.0
    %981 = vmatmul.mubr.f32.gmra.mxu0 %v235
    %v982 = vpop.f32.mrf.mxu0
    %v983 = vadd.f32 %v903, %v982
    %v984 = vpop.f32.mrf.mxu0
    %985 = vmatprep.mubr.f32.mxu0 0.0
    %986 = vmatmul.mubr.f32.gmra.mxu0 %v238
    %v987 = vpop.f32.mrf.mxu0
    %v988 = vadd.f32 %v908, %v987
    %v989 = vpop.f32.mrf.mxu0
    %990 = vdwg.mxu0
    %s991 = scalar_lea.vmem %s4, 1
    %v992 = vld [vmem:[%s991] sm:$0x1]
    %v994 = vlaneseq
    %v995 = vshrl.u32 %v994, 7
    %v996 = vsub.s32 0, %v995
    %v997 = vrot.slane %v992, %v996
    %v999 = vadd.f32 %v978, %v997
    %v1000 = vadd.f32 %v983, %v997
    %v1001 = vadd.f32 %v988, %v997
    %1005 = vrot.lane.b32.xlu0 %v999, 64
    %v1006 = vpop.permute.xlu0 %1005
    %1007 = vrot.lane.b32.xlu0 %v1000, 64
    %v1008 = vpop.permute.xlu0 %1007
    %1009 = vrot.lane.b32.xlu0 %v1001, 64
    %v1010 = vpop.permute.xlu0 %1009
    %1014 = vmatprep.subr.mxu0 0.0
    %1015 = vmatpush1.msra.mxu0 0.0
    %1016 = vmatprep.subr.mxu0 0.0
    %1017 = vmatpush1.msra.mxu0 0.0
    %1018 = vmatprep.subr.mxu0 0.0
    %1019 = vmatpush1.msra.mxu0 0.0
    %1020 = vmatprep.subr.mxu0 0.0
    %1021 = vmatpush1.msra.mxu0 0.0
    %1022 = vmatprep.subr.mxu0 0.0
    %1023 = vmatpush1.msra.mxu0 0.0
    %1024 = vmatprep.subr.mxu0 0.0
    %1025 = vmatpush1.msra.mxu0 0.0
    %1026 = vmatprep.subr.mxu0 0.0
    %1027 = vmatpush1.msra.mxu0 0.0
    %1028 = vmatprep.subr.mxu0 0.0
    %1029 = vmatpush1.msra.mxu0 0.0
    %1030 = vmatprep.subr.mxu0 0.0
    %1031 = vmatpush1.msra.mxu0 0.0
    %1032 = vmatprep.subr.mxu0 0.0
    %1033 = vmatpush1.msra.mxu0 0.0
    %1034 = vmatprep.subr.mxu0 0.0
    %1035 = vmatpush1.msra.mxu0 0.0
    %1036 = vmatprep.subr.mxu0 0.0
    %1037 = vmatpush1.msra.mxu0 0.0
    %1038 = vmatprep.subr.mxu0 0.0
    %1039 = vmatpush1.msra.mxu0 0.0
    %1040 = vmatprep.subr.mxu0 0.0
    %1041 = vmatpush1.msra.mxu0 %v1010
    %1042 = vmatprep.subr.mxu0 0.0
    %1043 = vmatpush1.msra.mxu0 %v1008
    %1044 = vmatprep.subr.mxu0 0.0
    %1045 = vmatpush1.msra.mxu0 %v1006
    %1046 = vmatprep.subr.mxu0 0.0
    %1047 = vmatpush2.msra.mxu0 0.0
    %1048 = vmatprep.subr.mxu0 0.0
    %1049 = vmatpush2.msra.mxu0 0.0
    %1050 = vmatprep.subr.mxu0 0.0
    %1051 = vmatpush2.msra.mxu0 0.0
    %1052 = vmatprep.subr.mxu0 0.0
    %1053 = vmatpush2.msra.mxu0 0.0
    %1054 = vmatprep.subr.mxu0 0.0
    %1055 = vmatpush2.msra.mxu0 0.0
    %1056 = vmatprep.subr.mxu0 0.0
    %1057 = vmatpush2.msra.mxu0 0.0
    %1058 = vmatprep.subr.mxu0 0.0
    %1059 = vmatpush2.msra.mxu0 0.0
    %1060 = vmatprep.subr.mxu0 0.0
    %1061 = vmatpush2.msra.mxu0 0.0
    %1062 = vmatprep.subr.mxu0 0.0
    %1063 = vmatpush2.msra.mxu0 0.0
    %1064 = vmatprep.subr.mxu0 0.0
    %1065 = vmatpush2.msra.mxu0 0.0
    %1066 = vmatprep.subr.mxu0 0.0
    %1067 = vmatpush2.msra.mxu0 0.0
    %1068 = vmatprep.subr.mxu0 0.0
    %1069 = vmatpush2.msra.mxu0 0.0
    %1070 = vmatprep.subr.mxu0 0.0
    %1071 = vmatpush2.msra.mxu0 0.0
    %1072 = vmatprep.subr.mxu0 0.0
    %1073 = vmatpush2.msra.mxu0 0.0
    %1074 = vmatprep.subr.mxu0 0.0
    %1075 = vmatpush2.msra.mxu0 0.0
    %1076 = vmatprep.subr.mxu0 0.0
    %1077 = vmatpush2.msra.mxu0 0.0
    %1078 = vmatprep.mubr.f32.mxu0 0.0
    %1079 = vmatmul.mubr.f32.gmra.mxu0 %v376
    %v1080 = vpop.f32.mrf.mxu0
    %v1081 = vadd.f32 0.0, %v1080
    %v1082 = vpop.f32.mrf.mxu0
    %1083 = vmatprep.mubr.f32.mxu0 0.0
    %1084 = vmatmul.mubr.f32.gmra.mxu0 %v379
    %v1085 = vpop.f32.mrf.mxu0
    %v1086 = vadd.f32 0.0, %v1085
    %v1087 = vpop.f32.mrf.mxu0
    %1088 = vdwg.mxu0
    %1089 = vmatprep.subr.mxu0 0.0
    %1090 = vmatpush1.msra.mxu0 0.0
    %1091 = vmatprep.subr.mxu0 0.0
    %1092 = vmatpush1.msra.mxu0 0.0
    %1093 = vmatprep.subr.mxu0 0.0
    %1094 = vmatpush1.msra.mxu0 0.0
    %1095 = vmatprep.subr.mxu0 0.0
    %1096 = vmatpush1.msra.mxu0 0.0
    %1097 = vmatprep.subr.mxu0 0.0
    %1098 = vmatpush1.msra.mxu0 0.0
    %1099 = vmatprep.subr.mxu0 0.0
    %1100 = vmatpush1.msra.mxu0 0.0
    %1101 = vmatprep.subr.mxu0 0.0
    %1102 = vmatpush1.msra.mxu0 0.0
    %1103 = vmatprep.subr.mxu0 0.0
    %1104 = vmatpush1.msra.mxu0 0.0
    %1105 = vmatprep.subr.mxu0 0.0
    %1106 = vmatpush1.msra.mxu0 0.0
    %1107 = vmatprep.subr.mxu0 0.0
    %1108 = vmatpush1.msra.mxu0 0.0
    %1109 = vmatprep.subr.mxu0 0.0
    %1110 = vmatpush1.msra.mxu0 0.0
    %1111 = vmatprep.subr.mxu0 0.0
    %1112 = vmatpush1.msra.mxu0 0.0
    %1113 = vmatprep.subr.mxu0 0.0
    %1114 = vmatpush1.msra.mxu0 0.0
    %1115 = vmatprep.subr.mxu0 0.0
    %1116 = vmatpush1.msra.mxu0 %v1001
    %1117 = vmatprep.subr.mxu0 0.0
    %1118 = vmatpush1.msra.mxu0 %v1000
    %1119 = vmatprep.subr.mxu0 0.0
    %1120 = vmatpush1.msra.mxu0 %v999
    %1121 = vmatprep.subr.mxu0 0.0
    %1122 = vmatpush2.msra.mxu0 0.0
    %1123 = vmatprep.subr.mxu0 0.0
    %1124 = vmatpush2.msra.mxu0 0.0
    %1125 = vmatprep.subr.mxu0 0.0
    %1126 = vmatpush2.msra.mxu0 0.0
    %1127 = vmatprep.subr.mxu0 0.0
    %1128 = vmatpush2.msra.mxu0 0.0
    %1129 = vmatprep.subr.mxu0 0.0
    %1130 = vmatpush2.msra.mxu0 0.0
    %1131 = vmatprep.subr.mxu0 0.0
    %1132 = vmatpush2.msra.mxu0 0.0
    %1133 = vmatprep.subr.mxu0 0.0
    %1134 = vmatpush2.msra.mxu0 0.0
    %1135 = vmatprep.subr.mxu0 0.0
    %1136 = vmatpush2.msra.mxu0 0.0
    %1137 = vmatprep.subr.mxu0 0.0
    %1138 = vmatpush2.msra.mxu0 0.0
    %1139 = vmatprep.subr.mxu0 0.0
    %1140 = vmatpush2.msra.mxu0 0.0
    %1141 = vmatprep.subr.mxu0 0.0
    %1142 = vmatpush2.msra.mxu0 0.0
    %1143 = vmatprep.subr.mxu0 0.0
    %1144 = vmatpush2.msra.mxu0 0.0
    %1145 = vmatprep.subr.mxu0 0.0
    %1146 = vmatpush2.msra.mxu0 0.0
    %1147 = vmatprep.subr.mxu0 0.0
    %1148 = vmatpush2.msra.mxu0 0.0
    %1149 = vmatprep.subr.mxu0 0.0
    %1150 = vmatpush2.msra.mxu0 0.0
    %1151 = vmatprep.subr.mxu0 0.0
    %1152 = vmatpush2.msra.mxu0 0.0
    %1153 = vmatprep.mubr.f32.mxu0 0.0
    %1154 = vmatmul.mubr.f32.gmra.mxu0 %v489
    %v1155 = vpop.f32.mrf.mxu0
    %v1156 = vadd.f32 %v1081, %v1155
    %v1157 = vpop.f32.mrf.mxu0
    %1158 = vmatprep.mubr.f32.mxu0 0.0
    %1159 = vmatmul.mubr.f32.gmra.mxu0 %v492
    %v1160 = vpop.f32.mrf.mxu0
    %v1161 = vadd.f32 %v1086, %v1160
    %v1162 = vpop.f32.mrf.mxu0
    %1163 = vdwg.mxu0
    %1164 = vrot.lane.b32.xlu0 %v733, 32
    %v1165 = vpop.permute.xlu0 %1164
    %1166 = vrot.lane.b32.xlu0 %v734, 32
    %v1167 = vpop.permute.xlu0 %1166
    %v1170 = vsel %vm575, %v1156, %v1165
    %v1171 = vsel %vm575, %v1161, %v1167
    %s1172 = scalar_lea.vmem %s5, 96
    %v1173 = vld [vmem:[%s1172] sm:$0xff]
    %v1174 = vld [vmem:[%s1172 + $0x8] sm:$0xff]
    %v1175 = vld [vmem:[%s1172 + $0x10] sm:$0xff]
    %v1176 = vld [vmem:[%s1172 + $0x18] sm:$0xff]
    %v1177 = vld [vmem:[%s1172 + $0x20] sm:$0xff]
    %v1178 = vld [vmem:[%s1172 + $0x28] sm:$0xff]
    %v1179 = vld [vmem:[%s1172 + $0x30] sm:$0xff]
    %v1180 = vld [vmem:[%s1172 + $0x38] sm:$0xff]
    %v1181 = vld [vmem:[%s1172 + $0x40] sm:$0xff]
    %v1182 = vld [vmem:[%s1172 + $0x48] sm:$0xff]
    %v1183 = vld [vmem:[%s1172 + $0x50] sm:$0xff]
    %v1184 = vld [vmem:[%s1172 + $0x58] sm:$0xff]
    %s1185 = scalar_lea.vmem %s6, 1
    %v1186 = vld [vmem:[%s1185] sm:$0x1]
    %v1188 = vlaneseq
    %v1189 = vshrl.u32 %v1188, 7
    %v1190 = vsub.s32 0, %v1189
    %v1191 = vrot.slane %v1186, %v1190
    %v1194 = vsel %vm597, %v1170, 0
    %v1197 = vsel %vm597, %v1171, 0
    %1199 = vmatprep.subr.mxu0 0.0
    %1200 = vmatpush1.msra.mxu0 0.0
    %1201 = vmatprep.subr.mxu0 0.0
    %1202 = vmatpush1.msra.mxu0 0.0
    %1203 = vmatprep.subr.mxu0 0.0
    %1204 = vmatpush1.msra.mxu0 0.0
    %1205 = vmatprep.subr.mxu0 0.0
    %1206 = vmatpush1.msra.mxu0 0.0
    %1207 = vmatprep.subr.mxu0 0.0
    %1208 = vmatpush1.msra.mxu0 %v1184
    %1209 = vmatprep.subr.mxu0 0.0
    %1210 = vmatpush1.msra.mxu0 %v1183
    %1211 = vmatprep.subr.mxu0 0.0
    %1212 = vmatpush1.msra.mxu0 %v1182
    %1213 = vmatprep.subr.mxu0 0.0
    %1214 = vmatpush1.msra.mxu0 %v1181
    %1215 = vmatprep.subr.mxu0 0.0
    %1216 = vmatpush1.msra.mxu0 %v1180
    %1217 = vmatprep.subr.mxu0 0.0
    %1218 = vmatpush1.msra.mxu0 %v1179
    %1219 = vmatprep.subr.mxu0 0.0
    %1220 = vmatpush1.msra.mxu0 %v1178
    %1221 = vmatprep.subr.mxu0 0.0
    %1222 = vmatpush1.msra.mxu0 %v1177
    %1223 = vmatprep.subr.mxu0 0.0
    %1224 = vmatpush1.msra.mxu0 %v1176
    %1225 = vmatprep.subr.mxu0 0.0
    %1226 = vmatpush1.msra.mxu0 %v1175
    %1227 = vmatprep.subr.mxu0 0.0
    %1228 = vmatpush1.msra.mxu0 %v1174
    %1229 = vmatprep.subr.mxu0 0.0
    %1230 = vmatpush1.msra.mxu0 %v1173
    %1231 = vmatprep.subr.mxu0 0.0
    %1232 = vmatpush2.msra.mxu0 0.0
    %1233 = vmatprep.subr.mxu0 0.0
    %1234 = vmatpush2.msra.mxu0 0.0
    %1235 = vmatprep.subr.mxu0 0.0
    %1236 = vmatpush2.msra.mxu0 0.0
    %1237 = vmatprep.subr.mxu0 0.0
    %1238 = vmatpush2.msra.mxu0 0.0
    %1239 = vmatprep.subr.mxu0 0.0
    %1240 = vmatpush2.msra.mxu0 0.0
    %1241 = vmatprep.subr.mxu0 0.0
    %1242 = vmatpush2.msra.mxu0 0.0
    %1243 = vmatprep.subr.mxu0 0.0
    %1244 = vmatpush2.msra.mxu0 0.0
    %1245 = vmatprep.subr.mxu0 0.0
    %1246 = vmatpush2.msra.mxu0 0.0
    %1247 = vmatprep.subr.mxu0 0.0
    %1248 = vmatpush2.msra.mxu0 0.0
    %1249 = vmatprep.subr.mxu0 0.0
    %1250 = vmatpush2.msra.mxu0 0.0
    %1251 = vmatprep.subr.mxu0 0.0
    %1252 = vmatpush2.msra.mxu0 0.0
    %1253 = vmatprep.subr.mxu0 0.0
    %1254 = vmatpush2.msra.mxu0 0.0
    %1255 = vmatprep.subr.mxu0 0.0
    %1256 = vmatpush2.msra.mxu0 0.0
    %1257 = vmatprep.subr.mxu0 0.0
    %1258 = vmatpush2.msra.mxu0 0.0
    %1259 = vmatprep.subr.mxu0 0.0
    %1260 = vmatpush2.msra.mxu0 0.0
    %1261 = vmatprep.subr.mxu0 0.0
    %1262 = vmatpush2.msra.mxu0 0.0
    %1263 = vmatprep.mubr.f32.mxu0 0.0
    %1264 = vmatmul.mubr.f32.gmra.mxu0 %v1194
    %v1265 = vpop.f32.mrf.mxu0
    %v1266 = vadd.f32 %v1191, %v1265
    %v1267 = vpop.f32.mrf.mxu0
    %1268 = vmatprep.mubr.f32.mxu0 0.0
    %1269 = vmatmul.mubr.f32.gmra.mxu0 %v1197
    %v1270 = vpop.f32.mrf.mxu0
    %v1271 = vadd.f32 %v1191, %v1270
    %v1272 = vpop.f32.mrf.mxu0
    %1273 = vdwg.mxu0
    %v1274 = vxor.u32 %v1266, 2147483648
    %v1275 = vxor.u32 %v1271, 2147483648
    %v1276 = vmul.f32 %v1274, 1.442695
    %v1277 = vpow.pop %v1276
    %v1278 = vmul.f32 %v1275, 1.442695
    %v1279 = vpow.pop %v1278
    %v1280 = vadd.f32 %v1277, 1.0
    %v1281 = vadd.f32 %v1279, 1.0
    %v1282 = vrcp.pop %v1280
    %v1283 = vmul.f32 1.0, %v1282
    %v1284 = vrcp.pop %v1281
    %v1285 = vmul.f32 1.0, %v1284
    %1288 = vrot.lane.b32.xlu0 %v1266, 32
    %v1289 = vpop.permute.xlu0 %1288
    %1290 = vrot.lane.b32.xlu0 %v1271, 32
    %v1291 = vpop.permute.xlu0 %1290
    %v1294 = vmul.f32 %v1283, %v1289
    %v1295 = vmul.f32 %v1285, %v1291
    %1298 = vrot.lane.b32.xlu0 %v1294, 64
    %v1299 = vpop.permute.xlu0 %1298
    %1300 = vrot.lane.b32.xlu0 %v1295, 64
    %v1301 = vpop.permute.xlu0 %1300
    %v1304 = vadd.f32 %v1266, %v1299
    %v1305 = vadd.f32 %v1271, %v1301
    %v1306 = vtanh.pop %v1304
    %v1307 = vtanh.pop %v1305
    %v1308 = vsub.f32 1.0, %v1283
    %v1309 = vsub.f32 1.0, %v1285
    %1312 = vrot.lane.b32.xlu0 %v1306, 96
    %v1313 = vpop.permute.xlu0 %1312
    %1314 = vrot.lane.b32.xlu0 %v1307, 96
    %v1315 = vpop.permute.xlu0 %1314
    %v1318 = vmul.f32 %v1308, %v1313
    %v1319 = vmul.f32 %v1309, %v1315
    %v1320 = vmul.f32 %v1283, %v733
    %v1321 = vmul.f32 %v1285, %v734
    %v1322 = vadd.f32 %v1318, %v1320
    %v1323 = vadd.f32 %v1319, %v1321
    %1326 = vrot.lane.b32.xlu0 %v1322, 96
    %v1327 = vpop.permute.xlu0 %1326
    %1328 = vrot.lane.b32.xlu0 %v1323, 96
    %v1329 = vpop.permute.xlu0 %1328
    %1332 = vst.msk [vmem:[#allocation5] sm:$0xff] %vm57, %v1327
    %1333 = vst.msk [vmem:[#allocation5 + $0x8] sm:$0xff] %vm57, %v1329
    // Predicated region
    $region34: #{node_emb_forward.1} parent=1 // pred_check
      _
    $region35: #{node_emb_forward.1} parent=1 // pred_check_branch
      %1335 = sbr.rel (0) target = $region37
    $region36: #{node_emb_forward.1} parent=1 // pred_region
      %s1337 = ssub.s32 256, 256
      %1338 = vsyncadd [#allocation4], %s1337
      %s1339 = sshll.u32 [#allocation5], 4
      %s1340 = int_to_ptr.vmem [resolvable:$true] %s1339
      %1345 = dma.vmem_to_hbm [thread:$0]  %s1340, 256, %s7, [#allocation4], 128, 128, 8
    $region37: #{node_emb_forward.1} parent=1 // pred_fallthru
      _
    // Predicated region
    $region38: #{node_emb_forward.1} parent=1 // pred_check
      _
    $region39: #{node_emb_forward.1} parent=1 // pred_check_branch
      %1347 = sbr.rel (0) target = $region41
    $region40: #{node_emb_forward.1} parent=1 // pred_region
      %1348 = dma.done [#allocation4], 256
    $region41: #{node_emb_forward.1} parent=1 // pred_fallthru
      _
    %1349 = vsyncpa [#allocation3], 1
    %1350 = vsyncpa [#allocation4], 1

</llo_original>
